<compile_context>
chip_gen: v7x
topology: tpu7x:2x2x1
jax: 0.10.0
libtpu: 0.0.40
codegen_flags: <defaults>
</compile_context>

<pallas_src>
import jax
import jax.numpy as jnp
from jax import lax
from jax.experimental import pallas as pl
from jax.experimental.pallas import tpu as pltpu


def _round_up(x, m):
    return (x + m - 1) // m * m


def _tap_masks(H, W, L):
    """(9, L) f32 boundary-validity mask per 3x3 tap, over L = B_TILE*H*W lanes."""
    HW = H * W
    pos = jnp.arange(L, dtype=jnp.int32) % HW
    row, col = pos // W, pos % W
    rows = []
    for dy in (-1, 0, 1):
        for dx in (-1, 0, 1):
            m = jnp.ones((L,), jnp.bool_)
            if dy < 0:
                m = m & (row >= -dy)
            if dy > 0:
                m = m & (row < H - dy)
            if dx < 0:
                m = m & (col >= -dx)
            if dx > 0:
                m = m & (col < W - dx)
            rows.append(m)
    return jnp.stack(rows, axis=0).astype(jnp.float32)


def _pick_b_tile(N, HW, cin_p, cout_p, vmem_budget=8 * 1024 * 1024):
    """Largest images-per-step that keeps lane blocks 128-aligned, scratch small
    and >= 2 grid steps (so both v7x TensorCores get work)."""
    best = 1
    for d in range(1, N + 1):
        if N % d:
            continue
        L = d * HW
        if d < N and L % 128:            # lane block must be a multiple of 128
            continue
        if 9 * (cin_p + cout_p) * L * 4 > vmem_budget:
            continue
        if N >= 2 and N // d < 2:        # keep >= 2 steps for megacore
            continue
        best = d
    return best


def _make_kernel(W, L, cin_p, cout_p):
    def _fill_taps(x, m_ref, patch_ref, C):
        # x: (C, L) f32.  Tap t = (dy+1)*3 + (dx+1) goes into rows
        # [t*C, (t+1)*C) of patch_ref (tap-major, channel-minor), matching the
        # packed weight layout built in init_params.  C is a multiple of 8 so
        # every store is an aligned full-tile vst.
        t = 0
        for dy in (-1, 0, 1):
            for dx in (-1, 0, 1):
                s = dy * W + dx
                tap = x if s == 0 else pltpu.roll(x, shift=(-s) % L, axis=1)
                if t != 4:                         # center tap always valid
                    tap = tap * m_ref[t:t + 1, :]  # zero out-of-image taps
                patch_ref[t * C:(t + 1) * C, :] = tap
                t += 1

    def kernel(x_ref, m_ref, w1_ref, b1_ref, w2_ref, b2_ref,
               o_ref, p1_ref, p2_ref):
        # x_ref : (cin_p, L)   B_TILE images, channel-major, spatial+batch on lanes
        # m_ref : (9, L)       precomputed boundary masks (constant block)
        # w1_ref: (cout_p, 9*cin_p)   im2col-packed conv1 weights, BN scale folded
        # w2_ref: (cout_p, 9*cout_p)  im2col-packed conv2 weights, BN scale folded
        # b*_ref: (cout_p, 1)  folded conv-bias + BN shift
        # o_ref : (cout_p, L)
        # p1/p2 : VMEM im2col patch scratch
        _fill_taps(x_ref[...], m_ref, p1_ref, cin_p)
        h = jnp.dot(w1_ref[...], p1_ref[...],
                    preferred_element_type=jnp.float32)        # (cout_p, L)
        h = jnp.maximum(h + b1_ref[...], 0.0)

        _fill_taps(h, m_ref, p2_ref, cout_p)
        o = jnp.dot(w2_ref[...], p2_ref[...],
                    preferred_element_type=jnp.float32)        # (cout_p, L)
        o = jnp.maximum(o + b2_ref[...], 0.0)

        # Dropout is identity in eval mode.
        o_ref[...] = o.astype(o_ref.dtype)

    return kernel


def double_conv_pallas(x_nchw, params):
    """DoubleConv forward (eval mode). x_nchw: (N, Cin, H, W) f32 -> (N, Cout, H, W)."""
    w1_p, b1_p, w2_p, b2_p, out_channels = params
    N, Cin, H, W = x_nchw.shape
    HW = H * W
    cout_p = w1_p.shape[0]
    cin_p = w1_p.shape[1] // 9
    assert cin_p >= Cin and w2_p.shape == (cout_p, 9 * cout_p)

    # Channel-major layout, batch concatenated along the lane axis; zero-pad
    # channels so every im2col tap slot starts at an 8-sublane boundary.
    x = jnp.transpose(x_nchw.reshape(N, Cin, HW), (1, 0, 2)).reshape(Cin, N * HW)
    if cin_p > Cin:
        x = jnp.concatenate(
            [x, jnp.zeros((cin_p - Cin, N * HW), x.dtype)], axis=0)

    b_tile = _pick_b_tile(N, HW, cin_p, cout_p)
    L = b_tile * HW
    grid = (N // b_tile,)
    masks = _tap_masks(H, W, L)                               # (9, L)

    kernel = _make_kernel(W, L, cin_p, cout_p)
    out = pl.pallas_call(
        kernel,
        out_shape=jax.ShapeDtypeStruct((cout_p, N * HW), jnp.float32),
        grid_spec=pltpu.PrefetchScalarGridSpec(
            num_scalar_prefetch=0,
            grid=grid,
            in_specs=[
                pl.BlockSpec((cin_p, L), lambda g: (0, g)),
                pl.BlockSpec((9, L), lambda g: (0, 0)),
                pl.BlockSpec((cout_p, 9 * cin_p), lambda g: (0, 0)),
                pl.BlockSpec((cout_p, 1), lambda g: (0, 0)),
                pl.BlockSpec((cout_p, 9 * cout_p), lambda g: (0, 0)),
                pl.BlockSpec((cout_p, 1), lambda g: (0, 0)),
            ],
            out_specs=pl.BlockSpec((cout_p, L), lambda g: (0, g)),
            scratch_shapes=[
                pltpu.VMEM((9 * cin_p, L), jnp.float32),
                pltpu.VMEM((9 * cout_p, L), jnp.float32),
            ],
        ),
        compiler_params=pltpu.CompilerParams(
            dimension_semantics=("parallel",)),
    )(x, masks, w1_p, b1_p, w2_p, b2_p)

    out = out[:out_channels].reshape(out_channels, N, H, W)
    return jnp.transpose(out, (1, 0, 2, 3))


def init_params(key, in_channels, out_channels, eps=1e-5):
    """Deterministic parameter init mirroring the module's __init__ shapes,
    plus offline packing (im2col layout, channel padding, BN folding)."""
    ks = jax.random.split(key, 8)
    w1 = jax.random.normal(ks[0], (out_channels, in_channels, 3, 3),
                           jnp.float32) * 0.1
    cb1 = jax.random.normal(ks[1], (out_channels,), jnp.float32) * 0.1
    w2 = jax.random.normal(ks[2], (out_channels, out_channels, 3, 3),
                           jnp.float32) * 0.1
    cb2 = jax.random.normal(ks[3], (out_channels,), jnp.float32) * 0.1
    # BatchNorm parameters (inference mode, running stats)
    g1 = 1.0 + 0.1 * jax.random.normal(ks[4], (out_channels,), jnp.float32)
    be1 = 0.1 * jax.random.normal(ks[5], (out_channels,), jnp.float32)
    m1 = 0.05 * jax.random.normal(ks[6], (out_channels,), jnp.float32)
    v1 = 1.0 + 0.1 * jnp.abs(jax.random.normal(ks[7], (out_channels,),
                                               jnp.float32))
    g2, be2, m2, v2 = g1 * 0.9, be1 * 0.5, m1 * 0.3, v1 * 1.1

    # Fold BN into per-channel scale/bias; the scale goes into the weights.
    s1 = g1 / jnp.sqrt(v1 + eps)
    b1 = (cb1 - m1) * s1 + be1
    s2 = g2 / jnp.sqrt(v2 + eps)
    b2 = (cb2 - m2) * s2 + be2

    cin_p = _round_up(in_channels, 8)
    cout_p = _round_up(out_channels, 8)

    def pack(w_oihw, scale, cin, cin_pad):
        # W2d[co, t*cin_pad + ci] = scale[co] * w[co, ci, ky, kx], t = ky*3+kx
        co = w_oihw.shape[0]
        w = jnp.transpose(w_oihw, (0, 2, 3, 1))                 # (co,3,3,ci)
        w = jnp.pad(w, ((0, 0), (0, 0), (0, 0), (0, cin_pad - cin)))
        w = w.reshape(co, 9 * cin_pad) * scale[:, None]          # fold BN scale
        return jnp.pad(w, ((0, cout_p - co), (0, 0)))            # pad out-chans

    w1_p = pack(w1, s1, in_channels, cin_p)
    w2_p = pack(w2, s2, out_channels, cout_p)
    b1_p = jnp.pad(b1, (0, cout_p - out_channels)).reshape(-1, 1)
    b2_p = jnp.pad(b2, (0, cout_p - out_channels)).reshape(-1, 1)

    params = (w1_p, b1_p, w2_p, b2_p, out_channels)
    raw = (w1, cb1, w2, cb2, (g1, be1, m1, v1), (g2, be2, m2, v2))
    return params, raw


def reference_double_conv(x_nchw, raw, eps=1e-5):
    """Pure-JAX (lax.conv) reference of the eval-mode forward pass."""
    w1, cb1, w2, cb2, bn1, bn2 = raw
    g1, be1, m1, v1 = bn1
    g2, be2, m2, v2 = bn2

    def conv(x, w_oihw, b):
        y = lax.conv_general_dilated(
            x, w_oihw, window_strides=(1, 1), padding=((1, 1), (1, 1)),
            dimension_numbers=("NCHW", "OIHW", "NCHW"))
        return y + b[None, :, None, None]

    def bn(x, g, be, m, v):
        return (x - m[None, :, None, None]) / jnp.sqrt(
            v[None, :, None, None] + eps) * g[None, :, None, None] \
            + be[None, :, None, None]

    h = jnp.maximum(bn(conv(x_nchw, w1, cb1), g1, be1, m1, v1), 0.0)
    o = jnp.maximum(bn(conv(h, w2, cb2), g2, be2, m2, v2), 0.0)
    return o  # Dropout identity in eval mode


if __name__ == "__main__":
    key = jax.random.PRNGKey(0)
    k_x, k_p = jax.random.split(key)

    # N=4 so the batched-lane path (2 images / grid step, 512 lanes) and the
    # 2-step parallel grid (v7x megacore) are both exercised.
    N, Cin, Cout, H, W = 4, 4, 8, 16, 16
    x = jax.random.normal(k_x, (N, Cin, H, W), jnp.float32)

    params, raw = init_params(k_p, Cin, Cout)

    out = double_conv_pallas(x, params)
    out = jax.block_until_ready(out)

    ref = reference_double_conv(x, raw)
    assert out.shape == (N, Cout, H, W)
    max_err = float(jnp.max(jnp.abs(out - ref)))
    assert jnp.allclose(out, ref, atol=1e-3, rtol=1e-3), max_err

    print("KERNEL_OK")
</pallas_src>

<mosaic_0001>
module attributes {stable_mosaic.version = 11 : i64} {
  func.func @kernel(%arg0: i32, %arg1: memref<8x512xf32, #tpu.memory_space<vmem>>, %arg2: memref<9x512xf32, #tpu.memory_space<vmem>>, %arg3: memref<8x72xf32, #tpu.memory_space<vmem>>, %arg4: memref<8x1xf32, #tpu.memory_space<vmem>>, %arg5: memref<8x72xf32, #tpu.memory_space<vmem>>, %arg6: memref<8x1xf32, #tpu.memory_space<vmem>>, %arg7: memref<8x512xf32, #tpu.memory_space<vmem>>, %arg8: memref<72x512xf32, #tpu.memory_space<vmem>>, %arg9: memref<72x512xf32, #tpu.memory_space<vmem>>) attributes {dimension_semantics = [#tpu.dimension_semantics<parallel>], iteration_bounds = array<i64: 2>, scalar_prefetch = 0 : i64, scratch_operands = 2 : i64, tpu.core_type = #tpu.core_type<tc>, window_params = [{transform_indices = @transform_0, window_bounds = array<i64: 8, 512>}, {pipeline_mode = #tpu.pipeline_mode<synchronous>, transform_indices = @transform_1, window_bounds = array<i64: 9, 512>}, {pipeline_mode = #tpu.pipeline_mode<synchronous>, transform_indices = @transform_2, window_bounds = array<i64: 8, 72>}, {pipeline_mode = #tpu.pipeline_mode<synchronous>, transform_indices = @transform_3, window_bounds = array<i64: 8, 1>}, {pipeline_mode = #tpu.pipeline_mode<synchronous>, transform_indices = @transform_4, window_bounds = array<i64: 8, 72>}, {pipeline_mode = #tpu.pipeline_mode<synchronous>, transform_indices = @transform_5, window_bounds = array<i64: 8, 1>}, {transform_indices = @transform_6, window_bounds = array<i64: 8, 512>}]} {
    %c0 = arith.constant 0 : index
    %c0_0 = arith.constant 0 : index
    %0 = vector.load %arg1[%c0, %c0_0] : memref<8x512xf32, #tpu.memory_space<vmem>>, vector<8x512xf32>
    %c17_i32 = arith.constant 17 : i32
    %1 = tpu.dynamic_rotate %0 by %c17_i32 dim 1 : vector<8x512xf32>, i32 -> vector<8x512xf32>
    %c0_1 = arith.constant 0 : index
    %c0_2 = arith.constant 0 : index
    %2 = vector.load %arg2[%c0_1, %c0_2] : memref<9x512xf32, #tpu.memory_space<vmem>>, vector<1x512xf32>
    %3 = vector.broadcast %2 : vector<1x512xf32> to vector<8x512xf32>
    %4 = arith.mulf %1, %3 : vector<8x512xf32>
    %c0_3 = arith.constant 0 : index
    %c0_4 = arith.constant 0 : index
    %5 = vector.load %arg8[%c0_3, %c0_4] : memref<72x512xf32, #tpu.memory_space<vmem>>, vector<8x512xf32>
    tpu.vector_store %arg8[%c0_3, %c0_4], %4 {strides = array<i32>} : memref<72x512xf32, #tpu.memory_space<vmem>>, vector<8x512xf32>,
    %c16_i32 = arith.constant 16 : i32
    %6 = tpu.dynamic_rotate %0 by %c16_i32 dim 1 : vector<8x512xf32>, i32 -> vector<8x512xf32>
    %c1 = arith.constant 1 : index
    %c0_5 = arith.constant 0 : index
    %7 = vector.load %arg2[%c1, %c0_5] : memref<9x512xf32, #tpu.memory_space<vmem>>, vector<1x512xf32>
    %8 = vector.broadcast %7 : vector<1x512xf32> to vector<8x512xf32>
    %9 = arith.mulf %6, %8 : vector<8x512xf32>
    %c8 = arith.constant 8 : index
    %c0_6 = arith.constant 0 : index
    %10 = vector.load %arg8[%c8, %c0_6] : memref<72x512xf32, #tpu.memory_space<vmem>>, vector<8x512xf32>
    tpu.vector_store %arg8[%c8, %c0_6], %9 {strides = array<i32>} : memref<72x512xf32, #tpu.memory_space<vmem>>, vector<8x512xf32>,
    %c15_i32 = arith.constant 15 : i32
    %11 = tpu.dynamic_rotate %0 by %c15_i32 dim 1 : vector<8x512xf32>, i32 -> vector<8x512xf32>
    %c2 = arith.constant 2 : index
    %c0_7 = arith.constant 0 : index
    %12 = vector.load %arg2[%c2, %c0_7] : memref<9x512xf32, #tpu.memory_space<vmem>>, vector<1x512xf32>
    %13 = vector.broadcast %12 : vector<1x512xf32> to vector<8x512xf32>
    %14 = arith.mulf %11, %13 : vector<8x512xf32>
    %c16 = arith.constant 16 : index
    %c0_8 = arith.constant 0 : index
    %15 = vector.load %arg8[%c16, %c0_8] : memref<72x512xf32, #tpu.memory_space<vmem>>, vector<8x512xf32>
    tpu.vector_store %arg8[%c16, %c0_8], %14 {strides = array<i32>} : memref<72x512xf32, #tpu.memory_space<vmem>>, vector<8x512xf32>,
    %c1_i32 = arith.constant 1 : i32
    %16 = tpu.dynamic_rotate %0 by %c1_i32 dim 1 : vector<8x512xf32>, i32 -> vector<8x512xf32>
    %c3 = arith.constant 3 : index
    %c0_9 = arith.constant 0 : index
    %17 = vector.load %arg2[%c3, %c0_9] : memref<9x512xf32, #tpu.memory_space<vmem>>, vector<1x512xf32>
    %18 = vector.broadcast %17 : vector<1x512xf32> to vector<8x512xf32>
    %19 = arith.mulf %16, %18 : vector<8x512xf32>
    %c24 = arith.constant 24 : index
    %c0_10 = arith.constant 0 : index
    %20 = vector.load %arg8[%c24, %c0_10] : memref<72x512xf32, #tpu.memory_space<vmem>>, vector<8x512xf32>
    tpu.vector_store %arg8[%c24, %c0_10], %19 {strides = array<i32>} : memref<72x512xf32, #tpu.memory_space<vmem>>, vector<8x512xf32>,
    %c32 = arith.constant 32 : index
    %c0_11 = arith.constant 0 : index
    %21 = vector.load %arg8[%c32, %c0_11] : memref<72x512xf32, #tpu.memory_space<vmem>>, vector<8x512xf32>
    tpu.vector_store %arg8[%c32, %c0_11], %0 {strides = array<i32>} : memref<72x512xf32, #tpu.memory_space<vmem>>, vector<8x512xf32>,
    %c511_i32 = arith.constant 511 : i32
    %22 = tpu.dynamic_rotate %0 by %c511_i32 dim 1 : vector<8x512xf32>, i32 -> vector<8x512xf32>
    %c5 = arith.constant 5 : index
    %c0_12 = arith.constant 0 : index
    %23 = vector.load %arg2[%c5, %c0_12] : memref<9x512xf32, #tpu.memory_space<vmem>>, vector<1x512xf32>
    %24 = vector.broadcast %23 : vector<1x512xf32> to vector<8x512xf32>
    %25 = arith.mulf %22, %24 : vector<8x512xf32>
    %c40 = arith.constant 40 : index
    %c0_13 = arith.constant 0 : index
    %26 = vector.load %arg8[%c40, %c0_13] : memref<72x512xf32, #tpu.memory_space<vmem>>, vector<8x512xf32>
    tpu.vector_store %arg8[%c40, %c0_13], %25 {strides = array<i32>} : memref<72x512xf32, #tpu.memory_space<vmem>>, vector<8x512xf32>,
    %c497_i32 = arith.constant 497 : i32
    %27 = tpu.dynamic_rotate %0 by %c497_i32 dim 1 : vector<8x512xf32>, i32 -> vector<8x512xf32>
    %c6 = arith.constant 6 : index
    %c0_14 = arith.constant 0 : index
    %28 = vector.load %arg2[%c6, %c0_14] : memref<9x512xf32, #tpu.memory_space<vmem>>, vector<1x512xf32>
    %29 = vector.broadcast %28 : vector<1x512xf32> to vector<8x512xf32>
    %30 = arith.mulf %27, %29 : vector<8x512xf32>
    %c48 = arith.constant 48 : index
    %c0_15 = arith.constant 0 : index
    %31 = vector.load %arg8[%c48, %c0_15] : memref<72x512xf32, #tpu.memory_space<vmem>>, vector<8x512xf32>
    tpu.vector_store %arg8[%c48, %c0_15], %30 {strides = array<i32>} : memref<72x512xf32, #tpu.memory_space<vmem>>, vector<8x512xf32>,
    %c496_i32 = arith.constant 496 : i32
    %32 = tpu.dynamic_rotate %0 by %c496_i32 dim 1 : vector<8x512xf32>, i32 -> vector<8x512xf32>
    %c7 = arith.constant 7 : index
    %c0_16 = arith.constant 0 : index
    %33 = vector.load %arg2[%c7, %c0_16] : memref<9x512xf32, #tpu.memory_space<vmem>>, vector<1x512xf32>
    %34 = vector.broadcast %33 : vector<1x512xf32> to vector<8x512xf32>
    %35 = arith.mulf %32, %34 : vector<8x512xf32>
    %c56 = arith.constant 56 : index
    %c0_17 = arith.constant 0 : index
    %36 = vector.load %arg8[%c56, %c0_17] : memref<72x512xf32, #tpu.memory_space<vmem>>, vector<8x512xf32>
    tpu.vector_store %arg8[%c56, %c0_17], %35 {strides = array<i32>} : memref<72x512xf32, #tpu.memory_space<vmem>>, vector<8x512xf32>,
    %c495_i32 = arith.constant 495 : i32
    %37 = tpu.dynamic_rotate %0 by %c495_i32 dim 1 : vector<8x512xf32>, i32 -> vector<8x512xf32>
    %c8_18 = arith.constant 8 : index
    %c0_19 = arith.constant 0 : index
    %38 = vector.load %arg2[%c8_18, %c0_19] : memref<9x512xf32, #tpu.memory_space<vmem>>, vector<1x512xf32>
    %39 = vector.broadcast %38 : vector<1x512xf32> to vector<8x512xf32>
    %40 = arith.mulf %37, %39 : vector<8x512xf32>
    %c64 = arith.constant 64 : index
    %c0_20 = arith.constant 0 : index
    %41 = vector.load %arg8[%c64, %c0_20] : memref<72x512xf32, #tpu.memory_space<vmem>>, vector<8x512xf32>
    tpu.vector_store %arg8[%c64, %c0_20], %40 {strides = array<i32>} : memref<72x512xf32, #tpu.memory_space<vmem>>, vector<8x512xf32>,
    %c0_21 = arith.constant 0 : index
    %c0_22 = arith.constant 0 : index
    %42 = vector.load %arg3[%c0_21, %c0_22] : memref<8x72xf32, #tpu.memory_space<vmem>>, vector<8x72xf32>
    %c0_23 = arith.constant 0 : index
    %c0_24 = arith.constant 0 : index
    %43 = vector.load %arg8[%c0_23, %c0_24] : memref<72x512xf32, #tpu.memory_space<vmem>>, vector<72x512xf32>
    %cst = arith.constant dense<0.000000e+00> : vector<8x512xf32>
    %44 = tpu.matmul %42, %43, %cst {dimension_numbers = #tpu.dot_dimension_numbers<[1], [0], [0], [1], [0, 0, 1, 1], [], []>} : vector<8x72xf32>, vector<72x512xf32>, vector<8x512xf32> -> vector<8x512xf32>
    %c0_25 = arith.constant 0 : index
    %c0_26 = arith.constant 0 : index
    %45 = vector.load %arg4[%c0_25, %c0_26] : memref<8x1xf32, #tpu.memory_space<vmem>>, vector<8x1xf32>
    %46 = vector.broadcast %45 : vector<8x1xf32> to vector<8x512xf32>
    %47 = arith.addf %44, %46 : vector<8x512xf32>
    %cst_27 = arith.constant 0.000000e+00 : f32
    %48 = vector.broadcast %cst_27 : f32 to vector<8x512xf32>
    %49 = arith.maximumf %47, %48 : vector<8x512xf32>
    %c17_i32_28 = arith.constant 17 : i32
    %50 = tpu.dynamic_rotate %49 by %c17_i32_28 dim 1 : vector<8x512xf32>, i32 -> vector<8x512xf32>
    %c0_29 = arith.constant 0 : index
    %c0_30 = arith.constant 0 : index
    %51 = vector.load %arg2[%c0_29, %c0_30] : memref<9x512xf32, #tpu.memory_space<vmem>>, vector<1x512xf32>
    %52 = vector.broadcast %51 : vector<1x512xf32> to vector<8x512xf32>
    %53 = arith.mulf %50, %52 : vector<8x512xf32>
    %c0_31 = arith.constant 0 : index
    %c0_32 = arith.constant 0 : index
    %54 = vector.load %arg9[%c0_31, %c0_32] : memref<72x512xf32, #tpu.memory_space<vmem>>, vector<8x512xf32>
    tpu.vector_store %arg9[%c0_31, %c0_32], %53 {strides = array<i32>} : memref<72x512xf32, #tpu.memory_space<vmem>>, vector<8x512xf32>,
    %c16_i32_33 = arith.constant 16 : i32
    %55 = tpu.dynamic_rotate %49 by %c16_i32_33 dim 1 : vector<8x512xf32>, i32 -> vector<8x512xf32>
    %c1_34 = arith.constant 1 : index
    %c0_35 = arith.constant 0 : index
    %56 = vector.load %arg2[%c1_34, %c0_35] : memref<9x512xf32, #tpu.memory_space<vmem>>, vector<1x512xf32>
    %57 = vector.broadcast %56 : vector<1x512xf32> to vector<8x512xf32>
    %58 = arith.mulf %55, %57 : vector<8x512xf32>
    %c8_36 = arith.constant 8 : index
    %c0_37 = arith.constant 0 : index
    %59 = vector.load %arg9[%c8_36, %c0_37] : memref<72x512xf32, #tpu.memory_space<vmem>>, vector<8x512xf32>
    tpu.vector_store %arg9[%c8_36, %c0_37], %58 {strides = array<i32>} : memref<72x512xf32, #tpu.memory_space<vmem>>, vector<8x512xf32>,
    %c15_i32_38 = arith.constant 15 : i32
    %60 = tpu.dynamic_rotate %49 by %c15_i32_38 dim 1 : vector<8x512xf32>, i32 -> vector<8x512xf32>
    %c2_39 = arith.constant 2 : index
    %c0_40 = arith.constant 0 : index
    %61 = vector.load %arg2[%c2_39, %c0_40] : memref<9x512xf32, #tpu.memory_space<vmem>>, vector<1x512xf32>
    %62 = vector.broadcast %61 : vector<1x512xf32> to vector<8x512xf32>
    %63 = arith.mulf %60, %62 : vector<8x512xf32>
    %c16_41 = arith.constant 16 : index
    %c0_42 = arith.constant 0 : index
    %64 = vector.load %arg9[%c16_41, %c0_42] : memref<72x512xf32, #tpu.memory_space<vmem>>, vector<8x512xf32>
    tpu.vector_store %arg9[%c16_41, %c0_42], %63 {strides = array<i32>} : memref<72x512xf32, #tpu.memory_space<vmem>>, vector<8x512xf32>,
    %c1_i32_43 = arith.constant 1 : i32
    %65 = tpu.dynamic_rotate %49 by %c1_i32_43 dim 1 : vector<8x512xf32>, i32 -> vector<8x512xf32>
    %c3_44 = arith.constant 3 : index
    %c0_45 = arith.constant 0 : index
    %66 = vector.load %arg2[%c3_44, %c0_45] : memref<9x512xf32, #tpu.memory_space<vmem>>, vector<1x512xf32>
    %67 = vector.broadcast %66 : vector<1x512xf32> to vector<8x512xf32>
    %68 = arith.mulf %65, %67 : vector<8x512xf32>
    %c24_46 = arith.constant 24 : index
    %c0_47 = arith.constant 0 : index
    %69 = vector.load %arg9[%c24_46, %c0_47] : memref<72x512xf32, #tpu.memory_space<vmem>>, vector<8x512xf32>
    tpu.vector_store %arg9[%c24_46, %c0_47], %68 {strides = array<i32>} : memref<72x512xf32, #tpu.memory_space<vmem>>, vector<8x512xf32>,
    %c32_48 = arith.constant 32 : index
    %c0_49 = arith.constant 0 : index
    %70 = vector.load %arg9[%c32_48, %c0_49] : memref<72x512xf32, #tpu.memory_space<vmem>>, vector<8x512xf32>
    tpu.vector_store %arg9[%c32_48, %c0_49], %49 {strides = array<i32>} : memref<72x512xf32, #tpu.memory_space<vmem>>, vector<8x512xf32>,
    %c511_i32_50 = arith.constant 511 : i32
    %71 = tpu.dynamic_rotate %49 by %c511_i32_50 dim 1 : vector<8x512xf32>, i32 -> vector<8x512xf32>
    %c5_51 = arith.constant 5 : index
    %c0_52 = arith.constant 0 : index
    %72 = vector.load %arg2[%c5_51, %c0_52] : memref<9x512xf32, #tpu.memory_space<vmem>>, vector<1x512xf32>
    %73 = vector.broadcast %72 : vector<1x512xf32> to vector<8x512xf32>
    %74 = arith.mulf %71, %73 : vector<8x512xf32>
    %c40_53 = arith.constant 40 : index
    %c0_54 = arith.constant 0 : index
    %75 = vector.load %arg9[%c40_53, %c0_54] : memref<72x512xf32, #tpu.memory_space<vmem>>, vector<8x512xf32>
    tpu.vector_store %arg9[%c40_53, %c0_54], %74 {strides = array<i32>} : memref<72x512xf32, #tpu.memory_space<vmem>>, vector<8x512xf32>,
    %c497_i32_55 = arith.constant 497 : i32
    %76 = tpu.dynamic_rotate %49 by %c497_i32_55 dim 1 : vector<8x512xf32>, i32 -> vector<8x512xf32>
    %c6_56 = arith.constant 6 : index
    %c0_57 = arith.constant 0 : index
    %77 = vector.load %arg2[%c6_56, %c0_57] : memref<9x512xf32, #tpu.memory_space<vmem>>, vector<1x512xf32>
    %78 = vector.broadcast %77 : vector<1x512xf32> to vector<8x512xf32>
    %79 = arith.mulf %76, %78 : vector<8x512xf32>
    %c48_58 = arith.constant 48 : index
    %c0_59 = arith.constant 0 : index
    %80 = vector.load %arg9[%c48_58, %c0_59] : memref<72x512xf32, #tpu.memory_space<vmem>>, vector<8x512xf32>
    tpu.vector_store %arg9[%c48_58, %c0_59], %79 {strides = array<i32>} : memref<72x512xf32, #tpu.memory_space<vmem>>, vector<8x512xf32>,
    %c496_i32_60 = arith.constant 496 : i32
    %81 = tpu.dynamic_rotate %49 by %c496_i32_60 dim 1 : vector<8x512xf32>, i32 -> vector<8x512xf32>
    %c7_61 = arith.constant 7 : index
    %c0_62 = arith.constant 0 : index
    %82 = vector.load %arg2[%c7_61, %c0_62] : memref<9x512xf32, #tpu.memory_space<vmem>>, vector<1x512xf32>
    %83 = vector.broadcast %82 : vector<1x512xf32> to vector<8x512xf32>
    %84 = arith.mulf %81, %83 : vector<8x512xf32>
    %c56_63 = arith.constant 56 : index
    %c0_64 = arith.constant 0 : index
    %85 = vector.load %arg9[%c56_63, %c0_64] : memref<72x512xf32, #tpu.memory_space<vmem>>, vector<8x512xf32>
    tpu.vector_store %arg9[%c56_63, %c0_64], %84 {strides = array<i32>} : memref<72x512xf32, #tpu.memory_space<vmem>>, vector<8x512xf32>,
    %c495_i32_65 = arith.constant 495 : i32
    %86 = tpu.dynamic_rotate %49 by %c495_i32_65 dim 1 : vector<8x512xf32>, i32 -> vector<8x512xf32>
    %c8_66 = arith.constant 8 : index
    %c0_67 = arith.constant 0 : index
    %87 = vector.load %arg2[%c8_66, %c0_67] : memref<9x512xf32, #tpu.memory_space<vmem>>, vector<1x512xf32>
    %88 = vector.broadcast %87 : vector<1x512xf32> to vector<8x512xf32>
    %89 = arith.mulf %86, %88 : vector<8x512xf32>
    %c64_68 = arith.constant 64 : index
    %c0_69 = arith.constant 0 : index
    %90 = vector.load %arg9[%c64_68, %c0_69] : memref<72x512xf32, #tpu.memory_space<vmem>>, vector<8x512xf32>
    tpu.vector_store %arg9[%c64_68, %c0_69], %89 {strides = array<i32>} : memref<72x512xf32, #tpu.memory_space<vmem>>, vector<8x512xf32>,
    %c0_70 = arith.constant 0 : index
    %c0_71 = arith.constant 0 : index
    %91 = vector.load %arg5[%c0_70, %c0_71] : memref<8x72xf32, #tpu.memory_space<vmem>>, vector<8x72xf32>
    %c0_72 = arith.constant 0 : index
    %c0_73 = arith.constant 0 : index
    %92 = vector.load %arg9[%c0_72, %c0_73] : memref<72x512xf32, #tpu.memory_space<vmem>>, vector<72x512xf32>
    %cst_74 = arith.constant dense<0.000000e+00> : vector<8x512xf32>
    %93 = tpu.matmul %91, %92, %cst_74 {dimension_numbers = #tpu.dot_dimension_numbers<[1], [0], [0], [1], [0, 0, 1, 1], [], []>} : vector<8x72xf32>, vector<72x512xf32>, vector<8x512xf32> -> vector<8x512xf32>
    %c0_75 = arith.constant 0 : index
    %c0_76 = arith.constant 0 : index
    %94 = vector.load %arg6[%c0_75, %c0_76] : memref<8x1xf32, #tpu.memory_space<vmem>>, vector<8x1xf32>
    %95 = vector.broadcast %94 : vector<8x1xf32> to vector<8x512xf32>
    %96 = arith.addf %93, %95 : vector<8x512xf32>
    %cst_77 = arith.constant 0.000000e+00 : f32
    %97 = vector.broadcast %cst_77 : f32 to vector<8x512xf32>
    %98 = arith.maximumf %96, %97 : vector<8x512xf32>
    %c0_78 = arith.constant 0 : index
    %c0_79 = arith.constant 0 : index
    %99 = vector.load %arg7[%c0_78, %c0_79] : memref<8x512xf32, #tpu.memory_space<vmem>>, vector<8x512xf32>
    tpu.vector_store %arg7[%c0_78, %c0_79], %98 {strides = array<i32>} : memref<8x512xf32, #tpu.memory_space<vmem>>, vector<8x512xf32>,
    return
  }
  func.func @transform_0(%arg0: i32) -> (i32, i32) {
    %c0_i32 = arith.constant 0 : i32
    %c0_i32_0 = arith.constant 0 : i32
    return %c0_i32, %arg0 : i32, i32
  }
  func.func @transform_1(%arg0: i32) -> (i32, i32) {
    %c0_i32 = arith.constant 0 : i32
    %c0_i32_0 = arith.constant 0 : i32
    %c0_i32_1 = arith.constant 0 : i32
    return %c0_i32, %c0_i32_0 : i32, i32
  }
  func.func @transform_2(%arg0: i32) -> (i32, i32) {
    %c0_i32 = arith.constant 0 : i32
    %c0_i32_0 = arith.constant 0 : i32
    %c0_i32_1 = arith.constant 0 : i32
    return %c0_i32, %c0_i32_0 : i32, i32
  }
  func.func @transform_3(%arg0: i32) -> (i32, i32) {
    %c0_i32 = arith.constant 0 : i32
    %c0_i32_0 = arith.constant 0 : i32
    %c0_i32_1 = arith.constant 0 : i32
    return %c0_i32, %c0_i32_0 : i32, i32
  }
  func.func @transform_4(%arg0: i32) -> (i32, i32) {
    %c0_i32 = arith.constant 0 : i32
    %c0_i32_0 = arith.constant 0 : i32
    %c0_i32_1 = arith.constant 0 : i32
    return %c0_i32, %c0_i32_0 : i32, i32
  }
  func.func @transform_5(%arg0: i32) -> (i32, i32) {
    %c0_i32 = arith.constant 0 : i32
    %c0_i32_0 = arith.constant 0 : i32
    %c0_i32_1 = arith.constant 0 : i32
    return %c0_i32, %c0_i32_0 : i32, i32
  }
  func.func @transform_6(%arg0: i32) -> (i32, i32) {
    %c0_i32 = arith.constant 0 : i32
    %c0_i32_0 = arith.constant 0 : i32
    return %c0_i32, %arg0 : i32, i32
  }
}

</mosaic_0001>

<llo_original>
// kernel: tpu_custom_call.1
$region0: #{tpu_custom_call.1}
  #allocation0 [shape = 'u32[]', space=smem, size = 0x4, offset = 0x4, fixed_abs, tag = 'smem constant byte address 0x4 - core index']
  #allocation1 [shape = 'u32[144,128]{1,0:T(1,128)}', space=vmem, size = 0x12000, scoped, tag = 'internal scratch']
  #allocation2 [shape = 'f32[72,512]{1,0:T(8,128)}', space=vmem, size = 0x24000, scoped, tag = 'scratch operand']
  #allocation3 [shape = 'f32[72,512]{1,0:T(8,128)}', space=vmem, size = 0x24000, scoped, tag = 'scratch operand']
  %s0 = inlined_call_operand.hbm [shape: f32[8,1024], index: 0, kind: input, shape index: {}]
  %s1 = inlined_call_operand.hbm [shape: f32[9,512], index: 1, kind: input, shape index: {}]
  %s2 = inlined_call_operand.vmem [shape: f32[8,72], index: 2, kind: input, shape index: {}]
  %s3 = inlined_call_operand.vmem [shape: f32[8,1], index: 3, kind: input, shape index: {}]
  %s4 = inlined_call_operand.vmem [shape: f32[8,72], index: 4, kind: input, shape index: {}]
  %s5 = inlined_call_operand.vmem [shape: f32[8,1], index: 5, kind: input, shape index: {}]
  %s6 = inlined_call_operand.hbm [shape: f32[8,1024], index: 6, kind: output, shape index: {}]
  %s7 = sld [smem:[#allocation0]]
  $region65: #{tpu_custom_call.1} parent=0
    _
  %s9 = ssub.s32 1, %s7
  %s10 = scalar_select 0, %s9, %s7
  $region1: #{tpu_custom_call.1} parent=0
    #allocation4 [shape = 'u8[32768]{0}', space=vmem, size = 0x8000, scoped, tag = 'input window, operand 0']
    #allocation5 [shape = 's32[2]{0}', space=sflag, size = 0x8, scoped, tag = 'scoped memory for tpu_custom_call.1']
    #allocation6 [shape = 's32[2]{0}', space=sflag, size = 0x8, scoped, tag = 'scoped memory for tpu_custom_call.1']
    #allocation7 [shape = 'u8[32768]{0}', space=vmem, size = 0x8000, scoped, tag = 'input window, operand 1, single buffered']
    #allocation8 [shape = 's32[1]{0}', space=sflag, size = 0x4, scoped, tag = 'scoped memory for tpu_custom_call.1']
    #allocation9 [shape = 'u8[32768]{0}', space=vmem, size = 0x8000, scoped, tag = 'output window, operand 0']
    %11 = vsyncpa [#allocation5], 0
    %s12 = scalar_lea.sflag [#allocation5], 1
    %13 = vsyncpa %s12, 0
    %14 = vsyncpa [#allocation8], 0
    %15 = vsyncpa [#allocation6], 0
    %s16 = scalar_lea.sflag [#allocation6], 1
    %17 = vsyncpa %s16, 0
    loop: start=0, step=1, limit=4
    $region2: #{tpu_custom_call.1} parent=1 // loop_pre_header
      _
    $region3: #{tpu_custom_call.1} parent=1 // loop_header
      %s19 = sphi 0, %s23
      %p20 = scmp.ge.s32.totalorder %s19, 4
      %s29 = sphi 0, %s31
      %s32 = sphi 0, %s29
      %s33 = sphi 0, %s32
      %s49 = sphi 0, %s33
      %s53 = sphi 0, %s53
      %s55 = sphi 0, %s53
      %s56 = sphi 0, %s55
      %s70 = sphi 0, %s56
      %s74 = sphi 0, %s74
      %s76 = sphi 0, %s74
      %s77 = sphi 0, %s76
      %s91 = sphi 0, %s77
      %s95 = sphi 0, %s95
      %s97 = sphi 0, %s95
      %s98 = sphi 0, %s97
      %s112 = sphi 0, %s98
      %s116 = sphi 0, %s116
      %s118 = sphi 0, %s116
      %s119 = sphi 0, %s118
      %s133 = sphi 0, %s119
      %s137 = sphi 0, %s137
      %s139 = sphi 0, %s137
      %s140 = sphi 0, %s139
      %s154 = sphi 0, %s140
      %s160 = sphi 0, %s162
      %s163 = sphi 0, %s160
      %s164 = sphi 0, %s163
      %s180 = sphi 0, %s164
    $region4: #{tpu_custom_call.1} parent=1 // loop_header_branch
      %22 = sbr.rel (%p20) target = $region8
    $region5: #{tpu_custom_call.1} parent=1 // loop_body
      %s24 = ssub.s32 %s19, 1
      %s25 = ssub.s32 %s19, 2
      %s26 = sadd.s32 %s19, 1
      %s27 = ssub.s32 %s19, %s26
      %p28 = scmp.eq.s32.totalorder %s27, 0
      %s30 = sadd.s32 %s29, 1
      %s31 = scalar_select %p28, %s29, %s30
      %p34 = pneg %p28
      %p35 = scmp.eq.s32.totalorder %s19, 1
      %p36 = por %p34, %p35
      %p37 = scmp.ne.s32.totalorder %s29, %s32
      %p38 = scmp.eq.s32.totalorder %s19, 0
      %p39 = por %p37, %p38
      %p40 = scmp.ne.s32.totalorder %s29, %s32
      %p41 = scmp.eq.s32.totalorder %s24, 1
      %p42 = por %p40, %p41
      %p43 = scmp.ne.s32.totalorder %s32, %s33
      %p44 = scmp.eq.s32.totalorder %s24, 0
      %p45 = por %p43, %p44
      %p46 = scmp.ne.s32.totalorder %s32, %s33
      %p47 = scmp.eq.s32.totalorder %s25, 1
      %p48 = por %p46, %p47
      %p50 = scmp.ne.s32.totalorder %s33, %s49
      %p51 = scmp.eq.s32.totalorder %s25, 0
      %p52 = por %p50, %p51
      %s54 = sadd.s32 %s53, 1
      %p57 = scmp.eq.s32.totalorder %s19, 1
      %p58 = scmp.ne.s32.totalorder %s53, %s55
      %p59 = scmp.eq.s32.totalorder %s19, 0
      %p60 = por %p58, %p59
      %p61 = scmp.ne.s32.totalorder %s53, %s55
      %p62 = scmp.eq.s32.totalorder %s24, 1
      %p63 = por %p61, %p62
      %p64 = scmp.ne.s32.totalorder %s55, %s56
      %p65 = scmp.eq.s32.totalorder %s24, 0
      %p66 = por %p64, %p65
      %p67 = scmp.ne.s32.totalorder %s55, %s56
      %p68 = scmp.eq.s32.totalorder %s25, 1
      %p69 = por %p67, %p68
      %p71 = scmp.ne.s32.totalorder %s56, %s70
      %p72 = scmp.eq.s32.totalorder %s25, 0
      %p73 = por %p71, %p72
      %s75 = sadd.s32 %s74, 1
      %p78 = scmp.eq.s32.totalorder %s19, 1
      %p79 = scmp.ne.s32.totalorder %s74, %s76
      %p80 = scmp.eq.s32.totalorder %s19, 0
      %p81 = por %p79, %p80
      %p82 = scmp.ne.s32.totalorder %s74, %s76
      %p83 = scmp.eq.s32.totalorder %s24, 1
      %p84 = por %p82, %p83
      %p85 = scmp.ne.s32.totalorder %s76, %s77
      %p86 = scmp.eq.s32.totalorder %s24, 0
      %p87 = por %p85, %p86
      %p88 = scmp.ne.s32.totalorder %s76, %s77
      %p89 = scmp.eq.s32.totalorder %s25, 1
      %p90 = por %p88, %p89
      %p92 = scmp.ne.s32.totalorder %s77, %s91
      %p93 = scmp.eq.s32.totalorder %s25, 0
      %p94 = por %p92, %p93
      %s96 = sadd.s32 %s95, 1
      %p99 = scmp.eq.s32.totalorder %s19, 1
      %p100 = scmp.ne.s32.totalorder %s95, %s97
      %p101 = scmp.eq.s32.totalorder %s19, 0
      %p102 = por %p100, %p101
      %p103 = scmp.ne.s32.totalorder %s95, %s97
      %p104 = scmp.eq.s32.totalorder %s24, 1
      %p105 = por %p103, %p104
      %p106 = scmp.ne.s32.totalorder %s97, %s98
      %p107 = scmp.eq.s32.totalorder %s24, 0
      %p108 = por %p106, %p107
      %p109 = scmp.ne.s32.totalorder %s97, %s98
      %p110 = scmp.eq.s32.totalorder %s25, 1
      %p111 = por %p109, %p110
      %p113 = scmp.ne.s32.totalorder %s98, %s112
      %p114 = scmp.eq.s32.totalorder %s25, 0
      %p115 = por %p113, %p114
      %s117 = sadd.s32 %s116, 1
      %p120 = scmp.eq.s32.totalorder %s19, 1
      %p121 = scmp.ne.s32.totalorder %s116, %s118
      %p122 = scmp.eq.s32.totalorder %s19, 0
      %p123 = por %p121, %p122
      %p124 = scmp.ne.s32.totalorder %s116, %s118
      %p125 = scmp.eq.s32.totalorder %s24, 1
      %p126 = por %p124, %p125
      %p127 = scmp.ne.s32.totalorder %s118, %s119
      %p128 = scmp.eq.s32.totalorder %s24, 0
      %p129 = por %p127, %p128
      %p130 = scmp.ne.s32.totalorder %s118, %s119
      %p131 = scmp.eq.s32.totalorder %s25, 1
      %p132 = por %p130, %p131
      %p134 = scmp.ne.s32.totalorder %s119, %s133
      %p135 = scmp.eq.s32.totalorder %s25, 0
      %p136 = por %p134, %p135
      %s138 = sadd.s32 %s137, 1
      %p141 = scmp.eq.s32.totalorder %s19, 1
      %p142 = scmp.ne.s32.totalorder %s137, %s139
      %p143 = scmp.eq.s32.totalorder %s19, 0
      %p144 = por %p142, %p143
      %p145 = scmp.ne.s32.totalorder %s137, %s139
      %p146 = scmp.eq.s32.totalorder %s24, 1
      %p147 = por %p145, %p146
      %p148 = scmp.ne.s32.totalorder %s139, %s140
      %p149 = scmp.eq.s32.totalorder %s24, 0
      %p150 = por %p148, %p149
      %p151 = scmp.ne.s32.totalorder %s139, %s140
      %p152 = scmp.eq.s32.totalorder %s25, 1
      %p153 = por %p151, %p152
      %p155 = scmp.ne.s32.totalorder %s140, %s154
      %p156 = scmp.eq.s32.totalorder %s25, 0
      %p157 = por %p155, %p156
      %s158 = ssub.s32 %s19, %s26
      %p159 = scmp.eq.s32.totalorder %s158, 0
      %s161 = sadd.s32 %s160, 1
      %s162 = scalar_select %p159, %s160, %s161
      %p165 = pneg %p159
      %p166 = scmp.eq.s32.totalorder %s19, 1
      %p167 = por %p165, %p166
      %p168 = scmp.ne.s32.totalorder %s160, %s163
      %p169 = scmp.eq.s32.totalorder %s19, 0
      %p170 = por %p168, %p169
      %p171 = scmp.ne.s32.totalorder %s160, %s163
      %p172 = scmp.eq.s32.totalorder %s24, 1
      %p173 = por %p171, %p172
      %p174 = scmp.ne.s32.totalorder %s163, %s164
      %p175 = scmp.eq.s32.totalorder %s24, 0
      %p176 = por %p174, %p175
      %p177 = scmp.ne.s32.totalorder %s163, %s164
      %p178 = scmp.eq.s32.totalorder %s25, 1
      %p179 = por %p177, %p178
      %p181 = scmp.ne.s32.totalorder %s164, %s180
      %p182 = scmp.eq.s32.totalorder %s25, 0
      %p183 = por %p181, %p182
      %p184 = scmp.le.s32.totalorder 1, %s19
      %p185 = scmp.lt.s32.totalorder %s19, 3
      %p186 = pnand %p184, %p185
      %p187 = pneg %p186
      // Predicated region
      $region9: #{tpu_custom_call.1} parent=5 // pred_check
        _
      $region10: #{tpu_custom_call.1} parent=5 // pred_check_branch
        %189 = sbr.rel (%p186) target = $region12
      $region11: #{tpu_custom_call.1} parent=5 // pred_region
        %s190 = ssub.s32 %s19, 1
        // Predicated region
        $region13: #{tpu_custom_call.1} parent=11 // pred_check
          %p191 = pneg %p66
        $region14: #{tpu_custom_call.1} parent=11 // pred_check_branch
          %193 = sbr.rel (%p191) target = $region16
        $region15: #{tpu_custom_call.1} parent=11 // pred_region
          %s195 = ssub.s32 1024, 1024
          %196 = vsyncadd [#allocation8], %s195
          %s197 = sshll.u32 [#allocation7], 4
          %s198 = int_to_ptr.vmem [resolvable:$true] %s197
          %203 = dma.hbm_to_vmem [thread:$0]  %s1, 1024, %s198, [#allocation8], 512, 512, 32
        $region16: #{tpu_custom_call.1} parent=11 // pred_fallthru
          _
        // Predicated region
        $region17: #{tpu_custom_call.1} parent=11 // pred_check
          %p204 = pneg %p87
        $region18: #{tpu_custom_call.1} parent=11 // pred_check_branch
          %206 = sbr.rel (%p204) target = $region20
        $region19: #{tpu_custom_call.1} parent=11 // pred_region
          _
        $region20: #{tpu_custom_call.1} parent=11 // pred_fallthru
          _
        // Predicated region
        $region21: #{tpu_custom_call.1} parent=11 // pred_check
          %p207 = pneg %p108
        $region22: #{tpu_custom_call.1} parent=11 // pred_check_branch
          %209 = sbr.rel (%p207) target = $region24
        $region23: #{tpu_custom_call.1} parent=11 // pred_region
          _
        $region24: #{tpu_custom_call.1} parent=11 // pred_fallthru
          _
        // Predicated region
        $region25: #{tpu_custom_call.1} parent=11 // pred_check
          %p210 = pneg %p129
        $region26: #{tpu_custom_call.1} parent=11 // pred_check_branch
          %212 = sbr.rel (%p210) target = $region28
        $region27: #{tpu_custom_call.1} parent=11 // pred_region
          _
        $region28: #{tpu_custom_call.1} parent=11 // pred_fallthru
          _
        // Predicated region
        $region29: #{tpu_custom_call.1} parent=11 // pred_check
          %p213 = pneg %p150
        $region30: #{tpu_custom_call.1} parent=11 // pred_check_branch
          %215 = sbr.rel (%p213) target = $region32
        $region31: #{tpu_custom_call.1} parent=11 // pred_region
          _
        $region32: #{tpu_custom_call.1} parent=11 // pred_fallthru
          _
      $region12: #{tpu_custom_call.1} parent=5 // pred_fallthru
        _
      %p216 = scmp.lt.s32.totalorder %s19, 2
      // Predicated region
      $region33: #{tpu_custom_call.1} parent=5 // pred_check
        %p217 = pneg %p216
      $region34: #{tpu_custom_call.1} parent=5 // pred_check_branch
        %219 = sbr.rel (%p217) target = $region36
      $region35: #{tpu_custom_call.1} parent=5 // pred_region
        // Predicated region
        $region37: #{tpu_custom_call.1} parent=35 // pred_check
          %p220 = pneg %p39
        $region38: #{tpu_custom_call.1} parent=35 // pred_check_branch
          %222 = sbr.rel (%p220) target = $region40
        $region39: #{tpu_custom_call.1} parent=35 // pred_region
          %s223 = sand.u32 %s29, 1
          %s224 = scalar_lea.sflag [#allocation5], %s223
          %s225 = sand.u32 %s29, 1
          %s226 = smul.addr %s225, 32
          %s227 = scalar_lea.vmem [#allocation4], %s226
          %s228 = smul.u32 4, %s19
          %s230 = ssub.s32 512, 512
          %231 = vsyncadd %s224, %s230
          %s232 = smul.addr %s228, 128
          %s233 = scalar_lea.hbm %s0, %s232
          %s235 = sshll.u32 %s227, 4
          %s236 = int_to_ptr.vmem [resolvable:$true] %s235
          %238 = dma.hbm_to_vmem [thread:$0]  %s233, 512, %s236, %s224
        $region40: #{tpu_custom_call.1} parent=35 // pred_fallthru
          _
      $region36: #{tpu_custom_call.1} parent=5 // pred_fallthru
        _
      %p239 = scmp.le.s32.totalorder 1, %s19
      %p240 = scmp.lt.s32.totalorder %s19, 3
      %p241 = pnand %p239, %p240
      %p242 = pneg %p241
      // Predicated region
      $region41: #{tpu_custom_call.1} parent=5 // pred_check
        _
      $region42: #{tpu_custom_call.1} parent=5 // pred_check_branch
        %244 = sbr.rel (%p241) target = $region44
      $region43: #{tpu_custom_call.1} parent=5 // pred_region
        %s245 = ssub.s32 %s19, 1
        %s246 = sand.u32 %s32, 1
        %s247 = scalar_lea.sflag [#allocation5], %s246
        %s248 = sand.u32 %s32, 1
        %s249 = smul.addr %s248, 32
        %s250 = scalar_lea.vmem [#allocation4], %s249
        // Predicated region
        $region45: #{tpu_custom_call.1} parent=43 // pred_check
          %p251 = pneg %p45
        $region46: #{tpu_custom_call.1} parent=43 // pred_check_branch
          %253 = sbr.rel (%p251) target = $region48
        $region47: #{tpu_custom_call.1} parent=43 // pred_region
          %254 = dma.done %s247, 512
        $region48: #{tpu_custom_call.1} parent=43 // pred_fallthru
          _
        // Predicated region
        $region49: #{tpu_custom_call.1} parent=43 // pred_check
          %p255 = pneg %p66
        $region50: #{tpu_custom_call.1} parent=43 // pred_check_branch
          %257 = sbr.rel (%p255) target = $region52
        $region51: #{tpu_custom_call.1} parent=43 // pred_region
          %258 = dma.done [#allocation8], 1024
        $region52: #{tpu_custom_call.1} parent=43 // pred_fallthru
          _
        %s259 = sand.u32 %s32, 1
        %s260 = scalar_lea.sflag [#allocation5], %s259
        %s261 = sand.u32 %s32, 1
        %s262 = smul.addr %s261, 32
        %s263 = scalar_lea.vmem [#allocation4], %s262
        %p264 = pneg %p45
        %p265 = pneg %p42
        %p266 = pneg %p66
        %p267 = pneg %p63
        %p268 = pneg %p87
        %p269 = pneg %p84
        %p270 = pneg %p108
        %p271 = pneg %p105
        %p272 = pneg %p129
        %p273 = pneg %p126
        %p274 = pneg %p150
        %p275 = pneg %p147
        %p276 = pneg %p176
        %p277 = pneg %p173
        %s278 = sand.u32 %s163, 1
        %s279 = scalar_lea.sflag [#allocation6], %s278
        %s280 = sand.u32 %s163, 1
        %s281 = smul.addr %s280, 32
        %s282 = scalar_lea.vmem [#allocation9], %s281
        %s283 = smul.u32 4, %s24
        %s284 = smul.u32 4, %s24
        %v285 = vld [vmem:[%s250] sm:$0xff]
        %v286 = vld [vmem:[%s250 + $0x8] sm:$0xff]
        %v287 = vld [vmem:[%s250 + $0x10] sm:$0xff]
        %v288 = vld [vmem:[%s250 + $0x18] sm:$0xff]
        %289 = vrot.lane.b32.xlu0 %v285, 17
        %v290 = vpop.permute.xlu0 %289
        %291 = vrot.lane.b32.xlu0 %v286, 17
        %v292 = vpop.permute.xlu0 %291
        %293 = vrot.lane.b32.xlu0 %v287, 17
        %v294 = vpop.permute.xlu0 %293
        %295 = vrot.lane.b32.xlu0 %v288, 17
        %v296 = vpop.permute.xlu0 %295
        %v297 = vlaneseq
        %v298 = vand.u32 %v297, 127
        %vm299 = vcmp.lt.s32.totalorder %v298, 17
        %v300 = vsel %vm299, %v294, %v296
        %v301 = vsel %vm299, %v292, %v294
        %v302 = vsel %vm299, %v290, %v292
        %v303 = vsel %vm299, %v296, %v290
        %v304 = vld [vmem:[#allocation7] ss:$8 sm:$0xf]
        %v306 = vlaneseq
        %v307 = vshrl.u32 %v306, 7
        %v308 = vsub.s32 0, %v307
        %v309 = vrot.slane %v304, %v308
        %v310 = vlaneseq
        %v311 = vshrl.u32 %v310, 7
        %v312 = vsub.s32 1, %v311
        %v313 = vrot.slane %v304, %v312
        %v314 = vlaneseq
        %v315 = vshrl.u32 %v314, 7
        %v316 = vsub.s32 2, %v315
        %v317 = vrot.slane %v304, %v316
        %v318 = vlaneseq
        %v319 = vshrl.u32 %v318, 7
        %v320 = vsub.s32 3, %v319
        %v321 = vrot.slane %v304, %v320
        %v326 = vmul.f32 %v303, %v309
        %v327 = vmul.f32 %v302, %v313
        %v328 = vmul.f32 %v301, %v317
        %v329 = vmul.f32 %v300, %v321
        %330 = vst [vmem:[#allocation2] sm:$0xff] %v326
        %331 = vst [vmem:[#allocation2 + $0x8] sm:$0xff] %v327
        %332 = vst [vmem:[#allocation2 + $0x10] sm:$0xff] %v328
        %333 = vst [vmem:[#allocation2 + $0x18] sm:$0xff] %v329
        %334 = vrot.lane.b32.xlu0 %v285, 16
        %v335 = vpop.permute.xlu0 %334
        %336 = vrot.lane.b32.xlu0 %v286, 16
        %v337 = vpop.permute.xlu0 %336
        %338 = vrot.lane.b32.xlu0 %v287, 16
        %v339 = vpop.permute.xlu0 %338
        %340 = vrot.lane.b32.xlu0 %v288, 16
        %v341 = vpop.permute.xlu0 %340
        %vm342 = vcmp.lt.s32.totalorder %v298, 16
        %v343 = vsel %vm342, %v339, %v341
        %v344 = vsel %vm342, %v337, %v339
        %v345 = vsel %vm342, %v335, %v337
        %v346 = vsel %vm342, %v341, %v335
        %s347 = scalar_lea.vmem [#allocation7], 1
        %v348 = vld [vmem:[%s347] ss:$8 sm:$0xf]
        %v350 = vlaneseq
        %v351 = vshrl.u32 %v350, 7
        %v352 = vsub.s32 0, %v351
        %v353 = vrot.slane %v348, %v352
        %v354 = vlaneseq
        %v355 = vshrl.u32 %v354, 7
        %v356 = vsub.s32 1, %v355
        %v357 = vrot.slane %v348, %v356
        %v358 = vlaneseq
        %v359 = vshrl.u32 %v358, 7
        %v360 = vsub.s32 2, %v359
        %v361 = vrot.slane %v348, %v360
        %v362 = vlaneseq
        %v363 = vshrl.u32 %v362, 7
        %v364 = vsub.s32 3, %v363
        %v365 = vrot.slane %v348, %v364
        %v370 = vmul.f32 %v346, %v353
        %v371 = vmul.f32 %v345, %v357
        %v372 = vmul.f32 %v344, %v361
        %v373 = vmul.f32 %v343, %v365
        %374 = vst [vmem:[#allocation2 + $0x20] sm:$0xff] %v370
        %375 = vst [vmem:[#allocation2 + $0x28] sm:$0xff] %v371
        %376 = vst [vmem:[#allocation2 + $0x30] sm:$0xff] %v372
        %377 = vst [vmem:[#allocation2 + $0x38] sm:$0xff] %v373
        %378 = vrot.lane.b32.xlu0 %v285, 15
        %v379 = vpop.permute.xlu0 %378
        %380 = vrot.lane.b32.xlu0 %v286, 15
        %v381 = vpop.permute.xlu0 %380
        %382 = vrot.lane.b32.xlu0 %v287, 15
        %v383 = vpop.permute.xlu0 %382
        %384 = vrot.lane.b32.xlu0 %v288, 15
        %v385 = vpop.permute.xlu0 %384
        %vm386 = vcmp.lt.s32.totalorder %v298, 15
        %v387 = vsel %vm386, %v383, %v385
        %v388 = vsel %vm386, %v381, %v383
        %v389 = vsel %vm386, %v379, %v381
        %v390 = vsel %vm386, %v385, %v379
        %s391 = scalar_lea.vmem [#allocation7], 2
        %v392 = vld [vmem:[%s391] ss:$8 sm:$0xf]
        %v394 = vlaneseq
        %v395 = vshrl.u32 %v394, 7
        %v396 = vsub.s32 0, %v395
        %v397 = vrot.slane %v392, %v396
        %v398 = vlaneseq
        %v399 = vshrl.u32 %v398, 7
        %v400 = vsub.s32 1, %v399
        %v401 = vrot.slane %v392, %v400
        %v402 = vlaneseq
        %v403 = vshrl.u32 %v402, 7
        %v404 = vsub.s32 2, %v403
        %v405 = vrot.slane %v392, %v404
        %v406 = vlaneseq
        %v407 = vshrl.u32 %v406, 7
        %v408 = vsub.s32 3, %v407
        %v409 = vrot.slane %v392, %v408
        %v414 = vmul.f32 %v390, %v397
        %v415 = vmul.f32 %v389, %v401
        %v416 = vmul.f32 %v388, %v405
        %v417 = vmul.f32 %v387, %v409
        %418 = vst [vmem:[#allocation2 + $0x40] sm:$0xff] %v414
        %419 = vst [vmem:[#allocation2 + $0x48] sm:$0xff] %v415
        %420 = vst [vmem:[#allocation2 + $0x50] sm:$0xff] %v416
        %421 = vst [vmem:[#allocation2 + $0x58] sm:$0xff] %v417
        %422 = vrot.lane.b32.xlu0 %v285, 1
        %v423 = vpop.permute.xlu0 %422
        %424 = vrot.lane.b32.xlu0 %v286, 1
        %v425 = vpop.permute.xlu0 %424
        %426 = vrot.lane.b32.xlu0 %v287, 1
        %v427 = vpop.permute.xlu0 %426
        %428 = vrot.lane.b32.xlu0 %v288, 1
        %v429 = vpop.permute.xlu0 %428
        %vm430 = vcmp.lt.s32.totalorder %v298, 1
        %v431 = vsel %vm430, %v427, %v429
        %v432 = vsel %vm430, %v425, %v427
        %v433 = vsel %vm430, %v423, %v425
        %v434 = vsel %vm430, %v429, %v423
        %s435 = scalar_lea.vmem [#allocation7], 3
        %v436 = vld [vmem:[%s435] ss:$8 sm:$0xf]
        %v438 = vlaneseq
        %v439 = vshrl.u32 %v438, 7
        %v440 = vsub.s32 0, %v439
        %v441 = vrot.slane %v436, %v440
        %v442 = vlaneseq
        %v443 = vshrl.u32 %v442, 7
        %v444 = vsub.s32 1, %v443
        %v445 = vrot.slane %v436, %v444
        %v446 = vlaneseq
        %v447 = vshrl.u32 %v446, 7
        %v448 = vsub.s32 2, %v447
        %v449 = vrot.slane %v436, %v448
        %v450 = vlaneseq
        %v451 = vshrl.u32 %v450, 7
        %v452 = vsub.s32 3, %v451
        %v453 = vrot.slane %v436, %v452
        %v458 = vmul.f32 %v434, %v441
        %v459 = vmul.f32 %v433, %v445
        %v460 = vmul.f32 %v432, %v449
        %v461 = vmul.f32 %v431, %v453
        %462 = vst [vmem:[#allocation2 + $0x60] sm:$0xff] %v458
        %463 = vst [vmem:[#allocation2 + $0x68] sm:$0xff] %v459
        %464 = vst [vmem:[#allocation2 + $0x70] sm:$0xff] %v460
        %465 = vst [vmem:[#allocation2 + $0x78] sm:$0xff] %v461
        %466 = vst [vmem:[#allocation2 + $0x80] sm:$0xff] %v285
        %467 = vst [vmem:[#allocation2 + $0x88] sm:$0xff] %v286
        %468 = vst [vmem:[#allocation2 + $0x90] sm:$0xff] %v287
        %469 = vst [vmem:[#allocation2 + $0x98] sm:$0xff] %v288
        %470 = vrot.lane.b32.xlu0 %v285, 127
        %v471 = vpop.permute.xlu0 %470
        %472 = vrot.lane.b32.xlu0 %v286, 127
        %v473 = vpop.permute.xlu0 %472
        %474 = vrot.lane.b32.xlu0 %v287, 127
        %v475 = vpop.permute.xlu0 %474
        %476 = vrot.lane.b32.xlu0 %v288, 127
        %v477 = vpop.permute.xlu0 %476
        %vm478 = vcmp.lt.s32.totalorder %v298, 127
        %v479 = vsel %vm478, %v475, %v477
        %v480 = vsel %vm478, %v473, %v475
        %v481 = vsel %vm478, %v471, %v473
        %v482 = vsel %vm478, %v477, %v471
        %s483 = scalar_lea.vmem [#allocation7], 5
        %v484 = vld [vmem:[%s483] ss:$8 sm:$0xf]
        %v486 = vlaneseq
        %v487 = vshrl.u32 %v486, 7
        %v488 = vsub.s32 0, %v487
        %v489 = vrot.slane %v484, %v488
        %v490 = vlaneseq
        %v491 = vshrl.u32 %v490, 7
        %v492 = vsub.s32 1, %v491
        %v493 = vrot.slane %v484, %v492
        %v494 = vlaneseq
        %v495 = vshrl.u32 %v494, 7
        %v496 = vsub.s32 2, %v495
        %v497 = vrot.slane %v484, %v496
        %v498 = vlaneseq
        %v499 = vshrl.u32 %v498, 7
        %v500 = vsub.s32 3, %v499
        %v501 = vrot.slane %v484, %v500
        %v506 = vmul.f32 %v481, %v489
        %v507 = vmul.f32 %v480, %v493
        %v508 = vmul.f32 %v479, %v497
        %v509 = vmul.f32 %v482, %v501
        %510 = vst [vmem:[#allocation2 + $0xa0] sm:$0xff] %v506
        %511 = vst [vmem:[#allocation2 + $0xa8] sm:$0xff] %v507
        %512 = vst [vmem:[#allocation2 + $0xb0] sm:$0xff] %v508
        %513 = vst [vmem:[#allocation2 + $0xb8] sm:$0xff] %v509
        %514 = vrot.lane.b32.xlu0 %v285, 113
        %v515 = vpop.permute.xlu0 %514
        %516 = vrot.lane.b32.xlu0 %v286, 113
        %v517 = vpop.permute.xlu0 %516
        %518 = vrot.lane.b32.xlu0 %v287, 113
        %v519 = vpop.permute.xlu0 %518
        %520 = vrot.lane.b32.xlu0 %v288, 113
        %v521 = vpop.permute.xlu0 %520
        %vm522 = vcmp.lt.s32.totalorder %v298, 113
        %v523 = vsel %vm522, %v519, %v521
        %v524 = vsel %vm522, %v517, %v519
        %v525 = vsel %vm522, %v515, %v517
        %v526 = vsel %vm522, %v521, %v515
        %s527 = scalar_lea.vmem [#allocation7], 6
        %v528 = vld [vmem:[%s527] ss:$8 sm:$0xf]
        %v530 = vlaneseq
        %v531 = vshrl.u32 %v530, 7
        %v532 = vsub.s32 0, %v531
        %v533 = vrot.slane %v528, %v532
        %v534 = vlaneseq
        %v535 = vshrl.u32 %v534, 7
        %v536 = vsub.s32 1, %v535
        %v537 = vrot.slane %v528, %v536
        %v538 = vlaneseq
        %v539 = vshrl.u32 %v538, 7
        %v540 = vsub.s32 2, %v539
        %v541 = vrot.slane %v528, %v540
        %v542 = vlaneseq
        %v543 = vshrl.u32 %v542, 7
        %v544 = vsub.s32 3, %v543
        %v545 = vrot.slane %v528, %v544
        %v550 = vmul.f32 %v525, %v533
        %v551 = vmul.f32 %v524, %v537
        %v552 = vmul.f32 %v523, %v541
        %v553 = vmul.f32 %v526, %v545
        %554 = vst [vmem:[#allocation2 + $0xc0] sm:$0xff] %v550
        %555 = vst [vmem:[#allocation2 + $0xc8] sm:$0xff] %v551
        %556 = vst [vmem:[#allocation2 + $0xd0] sm:$0xff] %v552
        %557 = vst [vmem:[#allocation2 + $0xd8] sm:$0xff] %v553
        %558 = vrot.lane.b32.xlu0 %v285, 112
        %v559 = vpop.permute.xlu0 %558
        %560 = vrot.lane.b32.xlu0 %v286, 112
        %v561 = vpop.permute.xlu0 %560
        %562 = vrot.lane.b32.xlu0 %v287, 112
        %v563 = vpop.permute.xlu0 %562
        %564 = vrot.lane.b32.xlu0 %v288, 112
        %v565 = vpop.permute.xlu0 %564
        %vm566 = vcmp.lt.s32.totalorder %v298, 112
        %v567 = vsel %vm566, %v563, %v565
        %v568 = vsel %vm566, %v561, %v563
        %v569 = vsel %vm566, %v559, %v561
        %v570 = vsel %vm566, %v565, %v559
        %s571 = scalar_lea.vmem [#allocation7], 7
        %v572 = vld [vmem:[%s571] ss:$8 sm:$0xf]
        %v574 = vlaneseq
        %v575 = vshrl.u32 %v574, 7
        %v576 = vsub.s32 0, %v575
        %v577 = vrot.slane %v572, %v576
        %v578 = vlaneseq
        %v579 = vshrl.u32 %v578, 7
        %v580 = vsub.s32 1, %v579
        %v581 = vrot.slane %v572, %v580
        %v582 = vlaneseq
        %v583 = vshrl.u32 %v582, 7
        %v584 = vsub.s32 2, %v583
        %v585 = vrot.slane %v572, %v584
        %v586 = vlaneseq
        %v587 = vshrl.u32 %v586, 7
        %v588 = vsub.s32 3, %v587
        %v589 = vrot.slane %v572, %v588
        %v594 = vmul.f32 %v569, %v577
        %v595 = vmul.f32 %v568, %v581
        %v596 = vmul.f32 %v567, %v585
        %v597 = vmul.f32 %v570, %v589
        %598 = vst [vmem:[#allocation2 + $0xe0] sm:$0xff] %v594
        %599 = vst [vmem:[#allocation2 + $0xe8] sm:$0xff] %v595
        %600 = vst [vmem:[#allocation2 + $0xf0] sm:$0xff] %v596
        %601 = vst [vmem:[#allocation2 + $0xf8] sm:$0xff] %v597
        %602 = vrot.lane.b32.xlu0 %v285, 111
        %v603 = vpop.permute.xlu0 %602
        %604 = vrot.lane.b32.xlu0 %v286, 111
        %v605 = vpop.permute.xlu0 %604
        %606 = vrot.lane.b32.xlu0 %v287, 111
        %v607 = vpop.permute.xlu0 %606
        %608 = vrot.lane.b32.xlu0 %v288, 111
        %v609 = vpop.permute.xlu0 %608
        %vm610 = vcmp.lt.s32.totalorder %v298, 111
        %v611 = vsel %vm610, %v607, %v609
        %v612 = vsel %vm610, %v605, %v607
        %v613 = vsel %vm610, %v603, %v605
        %v614 = vsel %vm610, %v609, %v603
        %s615 = scalar_lea.vmem [#allocation7], 32
        %v616 = vld [vmem:[%s615] ss:$8 sm:$0xf]
        %v618 = vlaneseq
        %v619 = vshrl.u32 %v618, 7
        %v620 = vsub.s32 0, %v619
        %v621 = vrot.slane %v616, %v620
        %v622 = vlaneseq
        %v623 = vshrl.u32 %v622, 7
        %v624 = vsub.s32 1, %v623
        %v625 = vrot.slane %v616, %v624
        %v626 = vlaneseq
        %v627 = vshrl.u32 %v626, 7
        %v628 = vsub.s32 2, %v627
        %v629 = vrot.slane %v616, %v628
        %v630 = vlaneseq
        %v631 = vshrl.u32 %v630, 7
        %v632 = vsub.s32 3, %v631
        %v633 = vrot.slane %v616, %v632
        %v638 = vmul.f32 %v613, %v621
        %v639 = vmul.f32 %v612, %v625
        %v640 = vmul.f32 %v611, %v629
        %v641 = vmul.f32 %v614, %v633
        %642 = vst [vmem:[#allocation2 + $0x100] sm:$0xff] %v638
        %643 = vst [vmem:[#allocation2 + $0x108] sm:$0xff] %v639
        %644 = vst [vmem:[#allocation2 + $0x110] sm:$0xff] %v640
        %645 = vst [vmem:[#allocation2 + $0x118] sm:$0xff] %v641
        %v646 = vld [vmem:[%s2] sm:$0xff]
        %v647 = vld [vmem:[#allocation2] sm:$0xff]
        %v648 = vld [vmem:[#allocation2 + $0x8] sm:$0xff]
        %v649 = vld [vmem:[#allocation2 + $0x10] sm:$0xff]
        %v650 = vld [vmem:[#allocation2 + $0x18] sm:$0xff]
        %v651 = vld [vmem:[#allocation2 + $0x20] sm:$0xff]
        %v652 = vld [vmem:[#allocation2 + $0x28] sm:$0xff]
        %v653 = vld [vmem:[#allocation2 + $0x30] sm:$0xff]
        %v654 = vld [vmem:[#allocation2 + $0x38] sm:$0xff]
        %v655 = vld [vmem:[#allocation2 + $0x40] sm:$0xff]
        %v656 = vld [vmem:[#allocation2 + $0x48] sm:$0xff]
        %v657 = vld [vmem:[#allocation2 + $0x50] sm:$0xff]
        %v658 = vld [vmem:[#allocation2 + $0x58] sm:$0xff]
        %v659 = vld [vmem:[#allocation2 + $0x60] sm:$0xff]
        %v660 = vld [vmem:[#allocation2 + $0x68] sm:$0xff]
        %v661 = vld [vmem:[#allocation2 + $0x70] sm:$0xff]
        %v662 = vld [vmem:[#allocation2 + $0x78] sm:$0xff]
        %v663 = vld [vmem:[#allocation2 + $0x80] sm:$0xff]
        %v664 = vld [vmem:[#allocation2 + $0x88] sm:$0xff]
        %v665 = vld [vmem:[#allocation2 + $0x90] sm:$0xff]
        %v666 = vld [vmem:[#allocation2 + $0x98] sm:$0xff]
        %v667 = vld [vmem:[#allocation2 + $0xa0] sm:$0xff]
        %v668 = vld [vmem:[#allocation2 + $0xa8] sm:$0xff]
        %v669 = vld [vmem:[#allocation2 + $0xb0] sm:$0xff]
        %v670 = vld [vmem:[#allocation2 + $0xb8] sm:$0xff]
        %v671 = vld [vmem:[#allocation2 + $0xc0] sm:$0xff]
        %v672 = vld [vmem:[#allocation2 + $0xc8] sm:$0xff]
        %v673 = vld [vmem:[#allocation2 + $0xd0] sm:$0xff]
        %v674 = vld [vmem:[#allocation2 + $0xd8] sm:$0xff]
        %v675 = vld [vmem:[#allocation2 + $0xe0] sm:$0xff]
        %v676 = vld [vmem:[#allocation2 + $0xe8] sm:$0xff]
        %v677 = vld [vmem:[#allocation2 + $0xf0] sm:$0xff]
        %v678 = vld [vmem:[#allocation2 + $0xf8] sm:$0xff]
        %v679 = vld [vmem:[#allocation2 + $0x100] sm:$0xff]
        %v680 = vld [vmem:[#allocation2 + $0x108] sm:$0xff]
        %v681 = vld [vmem:[#allocation2 + $0x110] sm:$0xff]
        %v682 = vld [vmem:[#allocation2 + $0x118] sm:$0xff]
        %v683 = vld [vmem:[%s3] sm:$0xff]
        %685 = vset.pattern.permute.xlu0 0
        %686 = vperm.xlu0 %685, %v683
        %v687 = vpop.permute.xlu0 %686
        %vm689 = vcmask 588800
        %v691 = vsel %vm689, %v646, 0
        %693 = vmatprep.subr.mxu0 %v648
        %694 = vmatpush1.msra.mxu0 %v647
        %695 = vmatprep.subr.mxu0 %v652
        %696 = vmatpush1.msra.mxu0 %v651
        %697 = vmatprep.subr.mxu0 %v656
        %698 = vmatpush1.msra.mxu0 %v655
        %699 = vmatprep.subr.mxu0 %v660
        %700 = vmatpush1.msra.mxu0 %v659
        %701 = vmatprep.subr.mxu0 %v664
        %702 = vmatpush1.msra.mxu0 %v663
        %703 = vmatprep.subr.mxu0 %v668
        %704 = vmatpush1.msra.mxu0 %v667
        %705 = vmatprep.subr.mxu0 %v672
        %706 = vmatpush1.msra.mxu0 %v671
        %707 = vmatprep.subr.mxu0 %v676
        %708 = vmatpush1.msra.mxu0 %v675
        %709 = vmatprep.subr.mxu0 %v680
        %710 = vmatpush1.msra.mxu0 %v679
        %711 = vmatprep.subr.mxu0 0.0
        %712 = vmatpush1.msra.mxu0 0.0
        %713 = vmatprep.subr.mxu0 0.0
        %714 = vmatpush1.msra.mxu0 0.0
        %715 = vmatprep.subr.mxu0 0.0
        %716 = vmatpush1.msra.mxu0 0.0
        %717 = vmatprep.subr.mxu0 0.0
        %718 = vmatpush1.msra.mxu0 0.0
        %719 = vmatprep.subr.mxu0 0.0
        %720 = vmatpush1.msra.mxu0 0.0
        %721 = vmatprep.subr.mxu0 0.0
        %722 = vmatpush1.msra.mxu0 0.0
        %723 = vmatprep.subr.mxu0 0.0
        %724 = vmatpush1.msra.mxu0 0.0
        %725 = vmatprep.subr.mxu0 0.0
        %726 = vmatpush1.msra.mxu0 0.0
        %727 = vmatprep.subr.mxu0 0.0
        %728 = vmatpush1.msra.mxu0 0.0
        %729 = vmatprep.subr.mxu0 0.0
        %730 = vmatpush1.msra.mxu0 0.0
        %731 = vmatprep.subr.mxu0 0.0
        %732 = vmatpush1.msra.mxu0 0.0
        %733 = vmatprep.subr.mxu0 0.0
        %734 = vmatpush1.msra.mxu0 0.0
        %735 = vmatprep.subr.mxu0 0.0
        %736 = vmatpush1.msra.mxu0 0.0
        %737 = vmatprep.subr.mxu0 0.0
        %738 = vmatpush1.msra.mxu0 0.0
        %739 = vmatprep.subr.mxu0 0.0
        %740 = vmatpush1.msra.mxu0 0.0
        %741 = vmatprep.subr.mxu0 0.0
        %742 = vmatpush1.msra.mxu0 0.0
        %743 = vmatprep.subr.mxu0 0.0
        %744 = vmatpush1.msra.mxu0 0.0
        %745 = vmatprep.subr.mxu0 0.0
        %746 = vmatpush1.msra.mxu0 0.0
        %747 = vmatprep.subr.mxu0 0.0
        %748 = vmatpush1.msra.mxu0 0.0
        %749 = vmatprep.subr.mxu0 0.0
        %750 = vmatpush1.msra.mxu0 0.0
        %751 = vmatprep.subr.mxu0 0.0
        %752 = vmatpush1.msra.mxu0 0.0
        %753 = vmatprep.subr.mxu0 0.0
        %754 = vmatpush1.msra.mxu0 0.0
        %755 = vmatprep.subr.mxu0 0.0
        %756 = vmatpush1.msra.mxu0 0.0
        %757 = vmatprep.mubr.f32.mxu0 0.0
        %758 = vmatmul.mubr.f32.gmra.mrb[0].mxu0 %v691
        %v759 = vpop.f32.mrb[0].mxu0
        %v760 = vadd.f32 %v687, %v759
        %v761 = vpop.f32.mrb[0].mxu0
        %v762 = vadd.f32 %v687, %v761
        %763 = vdwg.mxu0
        %764 = vmatprep.subr.mxu0 %v650
        %765 = vmatpush1.msra.mxu0 %v649
        %766 = vmatprep.subr.mxu0 %v654
        %767 = vmatpush1.msra.mxu0 %v653
        %768 = vmatprep.subr.mxu0 %v658
        %769 = vmatpush1.msra.mxu0 %v657
        %770 = vmatprep.subr.mxu0 %v662
        %771 = vmatpush1.msra.mxu0 %v661
        %772 = vmatprep.subr.mxu0 %v666
        %773 = vmatpush1.msra.mxu0 %v665
        %774 = vmatprep.subr.mxu0 %v670
        %775 = vmatpush1.msra.mxu0 %v669
        %776 = vmatprep.subr.mxu0 %v674
        %777 = vmatpush1.msra.mxu0 %v673
        %778 = vmatprep.subr.mxu0 %v678
        %779 = vmatpush1.msra.mxu0 %v677
        %780 = vmatprep.subr.mxu0 %v682
        %781 = vmatpush1.msra.mxu0 %v681
        %782 = vmatprep.subr.mxu0 0.0
        %783 = vmatpush1.msra.mxu0 0.0
        %784 = vmatprep.subr.mxu0 0.0
        %785 = vmatpush1.msra.mxu0 0.0
        %786 = vmatprep.subr.mxu0 0.0
        %787 = vmatpush1.msra.mxu0 0.0
        %788 = vmatprep.subr.mxu0 0.0
        %789 = vmatpush1.msra.mxu0 0.0
        %790 = vmatprep.subr.mxu0 0.0
        %791 = vmatpush1.msra.mxu0 0.0
        %792 = vmatprep.subr.mxu0 0.0
        %793 = vmatpush1.msra.mxu0 0.0
        %794 = vmatprep.subr.mxu0 0.0
        %795 = vmatpush1.msra.mxu0 0.0
        %796 = vmatprep.subr.mxu0 0.0
        %797 = vmatpush1.msra.mxu0 0.0
        %798 = vmatprep.subr.mxu0 0.0
        %799 = vmatpush1.msra.mxu0 0.0
        %800 = vmatprep.subr.mxu0 0.0
        %801 = vmatpush1.msra.mxu0 0.0
        %802 = vmatprep.subr.mxu0 0.0
        %803 = vmatpush1.msra.mxu0 0.0
        %804 = vmatprep.subr.mxu0 0.0
        %805 = vmatpush1.msra.mxu0 0.0
        %806 = vmatprep.subr.mxu0 0.0
        %807 = vmatpush1.msra.mxu0 0.0
        %808 = vmatprep.subr.mxu0 0.0
        %809 = vmatpush1.msra.mxu0 0.0
        %810 = vmatprep.subr.mxu0 0.0
        %811 = vmatpush1.msra.mxu0 0.0
        %812 = vmatprep.subr.mxu0 0.0
        %813 = vmatpush1.msra.mxu0 0.0
        %814 = vmatprep.subr.mxu0 0.0
        %815 = vmatpush1.msra.mxu0 0.0
        %816 = vmatprep.subr.mxu0 0.0
        %817 = vmatpush1.msra.mxu0 0.0
        %818 = vmatprep.subr.mxu0 0.0
        %819 = vmatpush1.msra.mxu0 0.0
        %820 = vmatprep.subr.mxu0 0.0
        %821 = vmatpush1.msra.mxu0 0.0
        %822 = vmatprep.subr.mxu0 0.0
        %823 = vmatpush1.msra.mxu0 0.0
        %824 = vmatprep.subr.mxu0 0.0
        %825 = vmatpush1.msra.mxu0 0.0
        %826 = vmatprep.subr.mxu0 0.0
        %827 = vmatpush1.msra.mxu0 0.0
        %828 = vmatprep.mubr.f32.mxu0 0.0
        %829 = vmatmul.mubr.f32.gmra.mrb[0].mxu0 %v691
        %v830 = vpop.f32.mrb[0].mxu0
        %v831 = vadd.f32 %v687, %v830
        %v832 = vpop.f32.mrb[0].mxu0
        %v833 = vadd.f32 %v687, %v832
        %834 = vdwg.mxu0
        %v835 = vmax.f32 %v760, 0.0
        %v836 = vmax.f32 %v762, 0.0
        %v837 = vmax.f32 %v831, 0.0
        %v838 = vmax.f32 %v833, 0.0
        %839 = vrot.lane.b32.xlu0 %v835, 17
        %v840 = vpop.permute.xlu0 %839
        %841 = vrot.lane.b32.xlu0 %v836, 17
        %v842 = vpop.permute.xlu0 %841
        %843 = vrot.lane.b32.xlu0 %v837, 17
        %v844 = vpop.permute.xlu0 %843
        %845 = vrot.lane.b32.xlu0 %v838, 17
        %v846 = vpop.permute.xlu0 %845
        %v847 = vsel %vm299, %v844, %v846
        %v848 = vsel %vm299, %v842, %v844
        %v849 = vsel %vm299, %v840, %v842
        %v850 = vsel %vm299, %v846, %v840
        %v851 = vld [vmem:[#allocation7] ss:$8 sm:$0xf]
        %v853 = vlaneseq
        %v854 = vshrl.u32 %v853, 7
        %v855 = vsub.s32 0, %v854
        %v856 = vrot.slane %v851, %v855
        %v857 = vlaneseq
        %v858 = vshrl.u32 %v857, 7
        %v859 = vsub.s32 1, %v858
        %v860 = vrot.slane %v851, %v859
        %v861 = vlaneseq
        %v862 = vshrl.u32 %v861, 7
        %v863 = vsub.s32 2, %v862
        %v864 = vrot.slane %v851, %v863
        %v865 = vlaneseq
        %v866 = vshrl.u32 %v865, 7
        %v867 = vsub.s32 3, %v866
        %v868 = vrot.slane %v851, %v867
        %v873 = vmul.f32 %v850, %v856
        %v874 = vmul.f32 %v849, %v860
        %v875 = vmul.f32 %v848, %v864
        %v876 = vmul.f32 %v847, %v868
        %877 = vst [vmem:[#allocation3] sm:$0xff] %v873
        %878 = vst [vmem:[#allocation3 + $0x8] sm:$0xff] %v874
        %879 = vst [vmem:[#allocation3 + $0x10] sm:$0xff] %v875
        %880 = vst [vmem:[#allocation3 + $0x18] sm:$0xff] %v876
        %881 = vrot.lane.b32.xlu0 %v835, 16
        %v882 = vpop.permute.xlu0 %881
        %883 = vrot.lane.b32.xlu0 %v836, 16
        %v884 = vpop.permute.xlu0 %883
        %885 = vrot.lane.b32.xlu0 %v837, 16
        %v886 = vpop.permute.xlu0 %885
        %887 = vrot.lane.b32.xlu0 %v838, 16
        %v888 = vpop.permute.xlu0 %887
        %v889 = vsel %vm342, %v886, %v888
        %v890 = vsel %vm342, %v884, %v886
        %v891 = vsel %vm342, %v882, %v884
        %v892 = vsel %vm342, %v888, %v882
        %v893 = vld [vmem:[%s347] ss:$8 sm:$0xf]
        %v895 = vlaneseq
        %v896 = vshrl.u32 %v895, 7
        %v897 = vsub.s32 0, %v896
        %v898 = vrot.slane %v893, %v897
        %v899 = vlaneseq
        %v900 = vshrl.u32 %v899, 7
        %v901 = vsub.s32 1, %v900
        %v902 = vrot.slane %v893, %v901
        %v903 = vlaneseq
        %v904 = vshrl.u32 %v903, 7
        %v905 = vsub.s32 2, %v904
        %v906 = vrot.slane %v893, %v905
        %v907 = vlaneseq
        %v908 = vshrl.u32 %v907, 7
        %v909 = vsub.s32 3, %v908
        %v910 = vrot.slane %v893, %v909
        %v915 = vmul.f32 %v892, %v898
        %v916 = vmul.f32 %v891, %v902
        %v917 = vmul.f32 %v890, %v906
        %v918 = vmul.f32 %v889, %v910
        %919 = vst [vmem:[#allocation3 + $0x20] sm:$0xff] %v915
        %920 = vst [vmem:[#allocation3 + $0x28] sm:$0xff] %v916
        %921 = vst [vmem:[#allocation3 + $0x30] sm:$0xff] %v917
        %922 = vst [vmem:[#allocation3 + $0x38] sm:$0xff] %v918
        %923 = vrot.lane.b32.xlu0 %v835, 15
        %v924 = vpop.permute.xlu0 %923
        %925 = vrot.lane.b32.xlu0 %v836, 15
        %v926 = vpop.permute.xlu0 %925
        %927 = vrot.lane.b32.xlu0 %v837, 15
        %v928 = vpop.permute.xlu0 %927
        %929 = vrot.lane.b32.xlu0 %v838, 15
        %v930 = vpop.permute.xlu0 %929
        %v931 = vsel %vm386, %v928, %v930
        %v932 = vsel %vm386, %v926, %v928
        %v933 = vsel %vm386, %v924, %v926
        %v934 = vsel %vm386, %v930, %v924
        %v935 = vld [vmem:[%s391] ss:$8 sm:$0xf]
        %v937 = vlaneseq
        %v938 = vshrl.u32 %v937, 7
        %v939 = vsub.s32 0, %v938
        %v940 = vrot.slane %v935, %v939
        %v941 = vlaneseq
        %v942 = vshrl.u32 %v941, 7
        %v943 = vsub.s32 1, %v942
        %v944 = vrot.slane %v935, %v943
        %v945 = vlaneseq
        %v946 = vshrl.u32 %v945, 7
        %v947 = vsub.s32 2, %v946
        %v948 = vrot.slane %v935, %v947
        %v949 = vlaneseq
        %v950 = vshrl.u32 %v949, 7
        %v951 = vsub.s32 3, %v950
        %v952 = vrot.slane %v935, %v951
        %v957 = vmul.f32 %v934, %v940
        %v958 = vmul.f32 %v933, %v944
        %v959 = vmul.f32 %v932, %v948
        %v960 = vmul.f32 %v931, %v952
        %961 = vst [vmem:[#allocation3 + $0x40] sm:$0xff] %v957
        %962 = vst [vmem:[#allocation3 + $0x48] sm:$0xff] %v958
        %963 = vst [vmem:[#allocation3 + $0x50] sm:$0xff] %v959
        %964 = vst [vmem:[#allocation3 + $0x58] sm:$0xff] %v960
        %965 = vrot.lane.b32.xlu0 %v835, 1
        %v966 = vpop.permute.xlu0 %965
        %967 = vrot.lane.b32.xlu0 %v836, 1
        %v968 = vpop.permute.xlu0 %967
        %969 = vrot.lane.b32.xlu0 %v837, 1
        %v970 = vpop.permute.xlu0 %969
        %971 = vrot.lane.b32.xlu0 %v838, 1
        %v972 = vpop.permute.xlu0 %971
        %v973 = vsel %vm430, %v970, %v972
        %v974 = vsel %vm430, %v968, %v970
        %v975 = vsel %vm430, %v966, %v968
        %v976 = vsel %vm430, %v972, %v966
        %v977 = vld [vmem:[%s435] ss:$8 sm:$0xf]
        %v979 = vlaneseq
        %v980 = vshrl.u32 %v979, 7
        %v981 = vsub.s32 0, %v980
        %v982 = vrot.slane %v977, %v981
        %v983 = vlaneseq
        %v984 = vshrl.u32 %v983, 7
        %v985 = vsub.s32 1, %v984
        %v986 = vrot.slane %v977, %v985
        %v987 = vlaneseq
        %v988 = vshrl.u32 %v987, 7
        %v989 = vsub.s32 2, %v988
        %v990 = vrot.slane %v977, %v989
        %v991 = vlaneseq
        %v992 = vshrl.u32 %v991, 7
        %v993 = vsub.s32 3, %v992
        %v994 = vrot.slane %v977, %v993
        %v999 = vmul.f32 %v976, %v982
        %v1000 = vmul.f32 %v975, %v986
        %v1001 = vmul.f32 %v974, %v990
        %v1002 = vmul.f32 %v973, %v994
        %1003 = vst [vmem:[#allocation3 + $0x60] sm:$0xff] %v999
        %1004 = vst [vmem:[#allocation3 + $0x68] sm:$0xff] %v1000
        %1005 = vst [vmem:[#allocation3 + $0x70] sm:$0xff] %v1001
        %1006 = vst [vmem:[#allocation3 + $0x78] sm:$0xff] %v1002
        %1007 = vst [vmem:[#allocation3 + $0x80] sm:$0xff] %v835
        %1008 = vst [vmem:[#allocation3 + $0x88] sm:$0xff] %v836
        %1009 = vst [vmem:[#allocation3 + $0x90] sm:$0xff] %v837
        %1010 = vst [vmem:[#allocation3 + $0x98] sm:$0xff] %v838
        %1011 = vrot.lane.b32.xlu0 %v835, 127
        %v1012 = vpop.permute.xlu0 %1011
        %1013 = vrot.lane.b32.xlu0 %v836, 127
        %v1014 = vpop.permute.xlu0 %1013
        %1015 = vrot.lane.b32.xlu0 %v837, 127
        %v1016 = vpop.permute.xlu0 %1015
        %1017 = vrot.lane.b32.xlu0 %v838, 127
        %v1018 = vpop.permute.xlu0 %1017
        %v1019 = vsel %vm478, %v1016, %v1018
        %v1020 = vsel %vm478, %v1014, %v1016
        %v1021 = vsel %vm478, %v1012, %v1014
        %v1022 = vsel %vm478, %v1018, %v1012
        %v1023 = vld [vmem:[%s483] ss:$8 sm:$0xf]
        %v1025 = vlaneseq
        %v1026 = vshrl.u32 %v1025, 7
        %v1027 = vsub.s32 0, %v1026
        %v1028 = vrot.slane %v1023, %v1027
        %v1029 = vlaneseq
        %v1030 = vshrl.u32 %v1029, 7
        %v1031 = vsub.s32 1, %v1030
        %v1032 = vrot.slane %v1023, %v1031
        %v1033 = vlaneseq
        %v1034 = vshrl.u32 %v1033, 7
        %v1035 = vsub.s32 2, %v1034
        %v1036 = vrot.slane %v1023, %v1035
        %v1037 = vlaneseq
        %v1038 = vshrl.u32 %v1037, 7
        %v1039 = vsub.s32 3, %v1038
        %v1040 = vrot.slane %v1023, %v1039
        %v1045 = vmul.f32 %v1021, %v1028
        %v1046 = vmul.f32 %v1020, %v1032
        %v1047 = vmul.f32 %v1019, %v1036
        %v1048 = vmul.f32 %v1022, %v1040
        %1049 = vst [vmem:[#allocation3 + $0xa0] sm:$0xff] %v1045
        %1050 = vst [vmem:[#allocation3 + $0xa8] sm:$0xff] %v1046
        %1051 = vst [vmem:[#allocation3 + $0xb0] sm:$0xff] %v1047
        %1052 = vst [vmem:[#allocation3 + $0xb8] sm:$0xff] %v1048
        %1053 = vrot.lane.b32.xlu0 %v835, 113
        %v1054 = vpop.permute.xlu0 %1053
        %1055 = vrot.lane.b32.xlu0 %v836, 113
        %v1056 = vpop.permute.xlu0 %1055
        %1057 = vrot.lane.b32.xlu0 %v837, 113
        %v1058 = vpop.permute.xlu0 %1057
        %1059 = vrot.lane.b32.xlu0 %v838, 113
        %v1060 = vpop.permute.xlu0 %1059
        %v1061 = vsel %vm522, %v1058, %v1060
        %v1062 = vsel %vm522, %v1056, %v1058
        %v1063 = vsel %vm522, %v1054, %v1056
        %v1064 = vsel %vm522, %v1060, %v1054
        %v1065 = vld [vmem:[%s527] ss:$8 sm:$0xf]
        %v1067 = vlaneseq
        %v1068 = vshrl.u32 %v1067, 7
        %v1069 = vsub.s32 0, %v1068
        %v1070 = vrot.slane %v1065, %v1069
        %v1071 = vlaneseq
        %v1072 = vshrl.u32 %v1071, 7
        %v1073 = vsub.s32 1, %v1072
        %v1074 = vrot.slane %v1065, %v1073
        %v1075 = vlaneseq
        %v1076 = vshrl.u32 %v1075, 7
        %v1077 = vsub.s32 2, %v1076
        %v1078 = vrot.slane %v1065, %v1077
        %v1079 = vlaneseq
        %v1080 = vshrl.u32 %v1079, 7
        %v1081 = vsub.s32 3, %v1080
        %v1082 = vrot.slane %v1065, %v1081
        %v1087 = vmul.f32 %v1063, %v1070
        %v1088 = vmul.f32 %v1062, %v1074
        %v1089 = vmul.f32 %v1061, %v1078
        %v1090 = vmul.f32 %v1064, %v1082
        %1091 = vst [vmem:[#allocation3 + $0xc0] sm:$0xff] %v1087
        %1092 = vst [vmem:[#allocation3 + $0xc8] sm:$0xff] %v1088
        %1093 = vst [vmem:[#allocation3 + $0xd0] sm:$0xff] %v1089
        %1094 = vst [vmem:[#allocation3 + $0xd8] sm:$0xff] %v1090
        %1095 = vrot.lane.b32.xlu0 %v835, 112
        %v1096 = vpop.permute.xlu0 %1095
        %1097 = vrot.lane.b32.xlu0 %v836, 112
        %v1098 = vpop.permute.xlu0 %1097
        %1099 = vrot.lane.b32.xlu0 %v837, 112
        %v1100 = vpop.permute.xlu0 %1099
        %1101 = vrot.lane.b32.xlu0 %v838, 112
        %v1102 = vpop.permute.xlu0 %1101
        %v1103 = vsel %vm566, %v1100, %v1102
        %v1104 = vsel %vm566, %v1098, %v1100
        %v1105 = vsel %vm566, %v1096, %v1098
        %v1106 = vsel %vm566, %v1102, %v1096
        %v1107 = vld [vmem:[%s571] ss:$8 sm:$0xf]
        %v1109 = vlaneseq
        %v1110 = vshrl.u32 %v1109, 7
        %v1111 = vsub.s32 0, %v1110
        %v1112 = vrot.slane %v1107, %v1111
        %v1113 = vlaneseq
        %v1114 = vshrl.u32 %v1113, 7
        %v1115 = vsub.s32 1, %v1114
        %v1116 = vrot.slane %v1107, %v1115
        %v1117 = vlaneseq
        %v1118 = vshrl.u32 %v1117, 7
        %v1119 = vsub.s32 2, %v1118
        %v1120 = vrot.slane %v1107, %v1119
        %v1121 = vlaneseq
        %v1122 = vshrl.u32 %v1121, 7
        %v1123 = vsub.s32 3, %v1122
        %v1124 = vrot.slane %v1107, %v1123
        %v1129 = vmul.f32 %v1105, %v1112
        %v1130 = vmul.f32 %v1104, %v1116
        %v1131 = vmul.f32 %v1103, %v1120
        %v1132 = vmul.f32 %v1106, %v1124
        %1133 = vst [vmem:[#allocation3 + $0xe0] sm:$0xff] %v1129
        %1134 = vst [vmem:[#allocation3 + $0xe8] sm:$0xff] %v1130
        %1135 = vst [vmem:[#allocation3 + $0xf0] sm:$0xff] %v1131
        %1136 = vst [vmem:[#allocation3 + $0xf8] sm:$0xff] %v1132
        %1137 = vrot.lane.b32.xlu0 %v835, 111
        %v1138 = vpop.permute.xlu0 %1137
        %1139 = vrot.lane.b32.xlu0 %v836, 111
        %v1140 = vpop.permute.xlu0 %1139
        %1141 = vrot.lane.b32.xlu0 %v837, 111
        %v1142 = vpop.permute.xlu0 %1141
        %1143 = vrot.lane.b32.xlu0 %v838, 111
        %v1144 = vpop.permute.xlu0 %1143
        %v1145 = vsel %vm610, %v1142, %v1144
        %v1146 = vsel %vm610, %v1140, %v1142
        %v1147 = vsel %vm610, %v1138, %v1140
        %v1148 = vsel %vm610, %v1144, %v1138
        %v1149 = vld [vmem:[%s615] ss:$8 sm:$0xf]
        %v1151 = vlaneseq
        %v1152 = vshrl.u32 %v1151, 7
        %v1153 = vsub.s32 0, %v1152
        %v1154 = vrot.slane %v1149, %v1153
        %v1155 = vlaneseq
        %v1156 = vshrl.u32 %v1155, 7
        %v1157 = vsub.s32 1, %v1156
        %v1158 = vrot.slane %v1149, %v1157
        %v1159 = vlaneseq
        %v1160 = vshrl.u32 %v1159, 7
        %v1161 = vsub.s32 2, %v1160
        %v1162 = vrot.slane %v1149, %v1161
        %v1163 = vlaneseq
        %v1164 = vshrl.u32 %v1163, 7
        %v1165 = vsub.s32 3, %v1164
        %v1166 = vrot.slane %v1149, %v1165
        %v1171 = vmul.f32 %v1147, %v1154
        %v1172 = vmul.f32 %v1146, %v1158
        %v1173 = vmul.f32 %v1145, %v1162
        %v1174 = vmul.f32 %v1148, %v1166
        %1175 = vst [vmem:[#allocation3 + $0x100] sm:$0xff] %v1171
        %1176 = vst [vmem:[#allocation3 + $0x108] sm:$0xff] %v1172
        %1177 = vst [vmem:[#allocation3 + $0x110] sm:$0xff] %v1173
        %1178 = vst [vmem:[#allocation3 + $0x118] sm:$0xff] %v1174
        %v1179 = vld [vmem:[%s4] sm:$0xff]
        %v1180 = vld [vmem:[#allocation3] sm:$0xff]
        %v1181 = vld [vmem:[#allocation3 + $0x8] sm:$0xff]
        %v1182 = vld [vmem:[#allocation3 + $0x10] sm:$0xff]
        %v1183 = vld [vmem:[#allocation3 + $0x18] sm:$0xff]
        %v1184 = vld [vmem:[#allocation3 + $0x20] sm:$0xff]
        %v1185 = vld [vmem:[#allocation3 + $0x28] sm:$0xff]
        %v1186 = vld [vmem:[#allocation3 + $0x30] sm:$0xff]
        %v1187 = vld [vmem:[#allocation3 + $0x38] sm:$0xff]
        %v1188 = vld [vmem:[#allocation3 + $0x40] sm:$0xff]
        %v1189 = vld [vmem:[#allocation3 + $0x48] sm:$0xff]
        %v1190 = vld [vmem:[#allocation3 + $0x50] sm:$0xff]
        %v1191 = vld [vmem:[#allocation3 + $0x58] sm:$0xff]
        %v1192 = vld [vmem:[#allocation3 + $0x60] sm:$0xff]
        %v1193 = vld [vmem:[#allocation3 + $0x68] sm:$0xff]
        %v1194 = vld [vmem:[#allocation3 + $0x70] sm:$0xff]
        %v1195 = vld [vmem:[#allocation3 + $0x78] sm:$0xff]
        %v1196 = vld [vmem:[#allocation3 + $0x80] sm:$0xff]
        %v1197 = vld [vmem:[#allocation3 + $0x88] sm:$0xff]
        %v1198 = vld [vmem:[#allocation3 + $0x90] sm:$0xff]
        %v1199 = vld [vmem:[#allocation3 + $0x98] sm:$0xff]
        %v1200 = vld [vmem:[#allocation3 + $0xa0] sm:$0xff]
        %v1201 = vld [vmem:[#allocation3 + $0xa8] sm:$0xff]
        %v1202 = vld [vmem:[#allocation3 + $0xb0] sm:$0xff]
        %v1203 = vld [vmem:[#allocation3 + $0xb8] sm:$0xff]
        %v1204 = vld [vmem:[#allocation3 + $0xc0] sm:$0xff]
        %v1205 = vld [vmem:[#allocation3 + $0xc8] sm:$0xff]
        %v1206 = vld [vmem:[#allocation3 + $0xd0] sm:$0xff]
        %v1207 = vld [vmem:[#allocation3 + $0xd8] sm:$0xff]
        %v1208 = vld [vmem:[#allocation3 + $0xe0] sm:$0xff]
        %v1209 = vld [vmem:[#allocation3 + $0xe8] sm:$0xff]
        %v1210 = vld [vmem:[#allocation3 + $0xf0] sm:$0xff]
        %v1211 = vld [vmem:[#allocation3 + $0xf8] sm:$0xff]
        %v1212 = vld [vmem:[#allocation3 + $0x100] sm:$0xff]
        %v1213 = vld [vmem:[#allocation3 + $0x108] sm:$0xff]
        %v1214 = vld [vmem:[#allocation3 + $0x110] sm:$0xff]
        %v1215 = vld [vmem:[#allocation3 + $0x118] sm:$0xff]
        %v1216 = vld [vmem:[%s5] sm:$0xff]
        %1218 = vset.pattern.permute.xlu0 0
        %1219 = vperm.xlu0 %1218, %v1216
        %v1220 = vpop.permute.xlu0 %1219
        %v1223 = vsel %vm689, %v1179, 0
        %1225 = vmatprep.subr.mxu0 %v1181
        %1226 = vmatpush1.msra.mxu0 %v1180
        %1227 = vmatprep.subr.mxu0 %v1185
        %1228 = vmatpush1.msra.mxu0 %v1184
        %1229 = vmatprep.subr.mxu0 %v1189
        %1230 = vmatpush1.msra.mxu0 %v1188
        %1231 = vmatprep.subr.mxu0 %v1193
        %1232 = vmatpush1.msra.mxu0 %v1192
        %1233 = vmatprep.subr.mxu0 %v1197
        %1234 = vmatpush1.msra.mxu0 %v1196
        %1235 = vmatprep.subr.mxu0 %v1201
        %1236 = vmatpush1.msra.mxu0 %v1200
        %1237 = vmatprep.subr.mxu0 %v1205
        %1238 = vmatpush1.msra.mxu0 %v1204
        %1239 = vmatprep.subr.mxu0 %v1209
        %1240 = vmatpush1.msra.mxu0 %v1208
        %1241 = vmatprep.subr.mxu0 %v1213
        %1242 = vmatpush1.msra.mxu0 %v1212
        %1243 = vmatprep.subr.mxu0 0.0
        %1244 = vmatpush1.msra.mxu0 0.0
        %1245 = vmatprep.subr.mxu0 0.0
        %1246 = vmatpush1.msra.mxu0 0.0
        %1247 = vmatprep.subr.mxu0 0.0
        %1248 = vmatpush1.msra.mxu0 0.0
        %1249 = vmatprep.subr.mxu0 0.0
        %1250 = vmatpush1.msra.mxu0 0.0
        %1251 = vmatprep.subr.mxu0 0.0
        %1252 = vmatpush1.msra.mxu0 0.0
        %1253 = vmatprep.subr.mxu0 0.0
        %1254 = vmatpush1.msra.mxu0 0.0
        %1255 = vmatprep.subr.mxu0 0.0
        %1256 = vmatpush1.msra.mxu0 0.0
        %1257 = vmatprep.subr.mxu0 0.0
        %1258 = vmatpush1.msra.mxu0 0.0
        %1259 = vmatprep.subr.mxu0 0.0
        %1260 = vmatpush1.msra.mxu0 0.0
        %1261 = vmatprep.subr.mxu0 0.0
        %1262 = vmatpush1.msra.mxu0 0.0
        %1263 = vmatprep.subr.mxu0 0.0
        %1264 = vmatpush1.msra.mxu0 0.0
        %1265 = vmatprep.subr.mxu0 0.0
        %1266 = vmatpush1.msra.mxu0 0.0
        %1267 = vmatprep.subr.mxu0 0.0
        %1268 = vmatpush1.msra.mxu0 0.0
        %1269 = vmatprep.subr.mxu0 0.0
        %1270 = vmatpush1.msra.mxu0 0.0
        %1271 = vmatprep.subr.mxu0 0.0
        %1272 = vmatpush1.msra.mxu0 0.0
        %1273 = vmatprep.subr.mxu0 0.0
        %1274 = vmatpush1.msra.mxu0 0.0
        %1275 = vmatprep.subr.mxu0 0.0
        %1276 = vmatpush1.msra.mxu0 0.0
        %1277 = vmatprep.subr.mxu0 0.0
        %1278 = vmatpush1.msra.mxu0 0.0
        %1279 = vmatprep.subr.mxu0 0.0
        %1280 = vmatpush1.msra.mxu0 0.0
        %1281 = vmatprep.subr.mxu0 0.0
        %1282 = vmatpush1.msra.mxu0 0.0
        %1283 = vmatprep.subr.mxu0 0.0
        %1284 = vmatpush1.msra.mxu0 0.0
        %1285 = vmatprep.subr.mxu0 0.0
        %1286 = vmatpush1.msra.mxu0 0.0
        %1287 = vmatprep.subr.mxu0 0.0
        %1288 = vmatpush1.msra.mxu0 0.0
        %1289 = vmatprep.mubr.f32.mxu0 0.0
        %1290 = vmatmul.mubr.f32.gmra.mrb[0].mxu0 %v1223
        %v1291 = vpop.f32.mrb[0].mxu0
        %v1292 = vadd.f32 %v1220, %v1291
        %v1293 = vpop.f32.mrb[0].mxu0
        %v1294 = vadd.f32 %v1220, %v1293
        %1295 = vdwg.mxu0
        %1296 = vmatprep.subr.mxu0 %v1183
        %1297 = vmatpush1.msra.mxu0 %v1182
        %1298 = vmatprep.subr.mxu0 %v1187
        %1299 = vmatpush1.msra.mxu0 %v1186
        %1300 = vmatprep.subr.mxu0 %v1191
        %1301 = vmatpush1.msra.mxu0 %v1190
        %1302 = vmatprep.subr.mxu0 %v1195
        %1303 = vmatpush1.msra.mxu0 %v1194
        %1304 = vmatprep.subr.mxu0 %v1199
        %1305 = vmatpush1.msra.mxu0 %v1198
        %1306 = vmatprep.subr.mxu0 %v1203
        %1307 = vmatpush1.msra.mxu0 %v1202
        %1308 = vmatprep.subr.mxu0 %v1207
        %1309 = vmatpush1.msra.mxu0 %v1206
        %1310 = vmatprep.subr.mxu0 %v1211
        %1311 = vmatpush1.msra.mxu0 %v1210
        %1312 = vmatprep.subr.mxu0 %v1215
        %1313 = vmatpush1.msra.mxu0 %v1214
        %1314 = vmatprep.subr.mxu0 0.0
        %1315 = vmatpush1.msra.mxu0 0.0
        %1316 = vmatprep.subr.mxu0 0.0
        %1317 = vmatpush1.msra.mxu0 0.0
        %1318 = vmatprep.subr.mxu0 0.0
        %1319 = vmatpush1.msra.mxu0 0.0
        %1320 = vmatprep.subr.mxu0 0.0
        %1321 = vmatpush1.msra.mxu0 0.0
        %1322 = vmatprep.subr.mxu0 0.0
        %1323 = vmatpush1.msra.mxu0 0.0
        %1324 = vmatprep.subr.mxu0 0.0
        %1325 = vmatpush1.msra.mxu0 0.0
        %1326 = vmatprep.subr.mxu0 0.0
        %1327 = vmatpush1.msra.mxu0 0.0
        %1328 = vmatprep.subr.mxu0 0.0
        %1329 = vmatpush1.msra.mxu0 0.0
        %1330 = vmatprep.subr.mxu0 0.0
        %1331 = vmatpush1.msra.mxu0 0.0
        %1332 = vmatprep.subr.mxu0 0.0
        %1333 = vmatpush1.msra.mxu0 0.0
        %1334 = vmatprep.subr.mxu0 0.0
        %1335 = vmatpush1.msra.mxu0 0.0
        %1336 = vmatprep.subr.mxu0 0.0
        %1337 = vmatpush1.msra.mxu0 0.0
        %1338 = vmatprep.subr.mxu0 0.0
        %1339 = vmatpush1.msra.mxu0 0.0
        %1340 = vmatprep.subr.mxu0 0.0
        %1341 = vmatpush1.msra.mxu0 0.0
        %1342 = vmatprep.subr.mxu0 0.0
        %1343 = vmatpush1.msra.mxu0 0.0
        %1344 = vmatprep.subr.mxu0 0.0
        %1345 = vmatpush1.msra.mxu0 0.0
        %1346 = vmatprep.subr.mxu0 0.0
        %1347 = vmatpush1.msra.mxu0 0.0
        %1348 = vmatprep.subr.mxu0 0.0
        %1349 = vmatpush1.msra.mxu0 0.0
        %1350 = vmatprep.subr.mxu0 0.0
        %1351 = vmatpush1.msra.mxu0 0.0
        %1352 = vmatprep.subr.mxu0 0.0
        %1353 = vmatpush1.msra.mxu0 0.0
        %1354 = vmatprep.subr.mxu0 0.0
        %1355 = vmatpush1.msra.mxu0 0.0
        %1356 = vmatprep.subr.mxu0 0.0
        %1357 = vmatpush1.msra.mxu0 0.0
        %1358 = vmatprep.subr.mxu0 0.0
        %1359 = vmatpush1.msra.mxu0 0.0
        %1360 = vmatprep.mubr.f32.mxu0 0.0
        %1361 = vmatmul.mubr.f32.gmra.mrb[0].mxu0 %v1223
        %v1362 = vpop.f32.mrb[0].mxu0
        %v1363 = vadd.f32 %v1220, %v1362
        %v1364 = vpop.f32.mrb[0].mxu0
        %v1365 = vadd.f32 %v1220, %v1364
        %1366 = vdwg.mxu0
        %v1367 = vmax.f32 %v1292, 0.0
        %v1368 = vmax.f32 %v1294, 0.0
        %v1369 = vmax.f32 %v1363, 0.0
        %v1370 = vmax.f32 %v1365, 0.0
        %1371 = vst [vmem:[%s282] sm:$0xff] %v1367
        %1372 = vst [vmem:[%s282 + $0x8] sm:$0xff] %v1368
        %1373 = vst [vmem:[%s282 + $0x10] sm:$0xff] %v1369
        %1374 = vst [vmem:[%s282 + $0x18] sm:$0xff] %v1370
        %s1375 = sand.u32 %s163, 1
        %s1376 = scalar_lea.sflag [#allocation6], %s1375
        %s1377 = sand.u32 %s163, 1
        %s1378 = smul.addr %s1377, 32
        %s1379 = scalar_lea.vmem [#allocation9], %s1378
        // Predicated region
        $region53: #{tpu_custom_call.1} parent=43 // pred_check
          %p1380 = pneg %p173
        $region54: #{tpu_custom_call.1} parent=43 // pred_check_branch
          %1382 = sbr.rel (%p1380) target = $region56
        $region55: #{tpu_custom_call.1} parent=43 // pred_region
          %s1383 = smul.u32 4, %s24
          %s1385 = ssub.s32 512, 512
          %1386 = vsyncadd %s1376, %s1385
          %s1387 = smul.addr %s1383, 128
          %s1388 = scalar_lea.hbm %s6, %s1387
          %s1390 = sshll.u32 %s1379, 4
          %s1391 = int_to_ptr.vmem [resolvable:$true] %s1390
          %1393 = dma.vmem_to_hbm [thread:$0]  %s1391, 512, %s1388, %s1376
        $region56: #{tpu_custom_call.1} parent=43 // pred_fallthru
          _
      $region44: #{tpu_custom_call.1} parent=5 // pred_fallthru
        _
      %p1394 = scmp.le.s32.totalorder 2, %s19
      // Predicated region
      $region57: #{tpu_custom_call.1} parent=5 // pred_check
        %p1395 = pneg %p1394
      $region58: #{tpu_custom_call.1} parent=5 // pred_check_branch
        %1397 = sbr.rel (%p1395) target = $region60
      $region59: #{tpu_custom_call.1} parent=5 // pred_region
        %s1398 = ssub.s32 %s19, 2
        // Predicated region
        $region61: #{tpu_custom_call.1} parent=59 // pred_check
          %p1399 = pneg %p179
        $region62: #{tpu_custom_call.1} parent=59 // pred_check_branch
          %1401 = sbr.rel (%p1399) target = $region64
        $region63: #{tpu_custom_call.1} parent=59 // pred_region
          %s1402 = sand.u32 %s164, 1
          %s1403 = scalar_lea.sflag [#allocation6], %s1402
          %s1404 = sand.u32 %s164, 1
          %s1405 = smul.addr %s1404, 32
          %s1406 = scalar_lea.vmem [#allocation9], %s1405
          %1407 = dma.done %s1403, 512
        $region64: #{tpu_custom_call.1} parent=59 // pred_fallthru
          _
      $region60: #{tpu_custom_call.1} parent=5 // pred_fallthru
        _
    $region6: #{tpu_custom_call.1} parent=1 // loop_footer
      %s23 = sadd.s32 1, %s19
    $region7: #{tpu_custom_call.1} parent=1 // loop_footer_branch
      %18 = sbr.rel target = $region3
    $region8: #{tpu_custom_call.1} parent=1 // loop_exit
      _
    %1408 = vsyncpa [#allocation5], 1
    %s1409 = scalar_lea.sflag [#allocation5], 1
    %1410 = vsyncpa %s1409, 1
    %1411 = vsyncpa [#allocation8], 1
    %1412 = vsyncpa [#allocation6], 1
    %s1413 = scalar_lea.sflag [#allocation6], 1
    %1414 = vsyncpa %s1413, 1

</llo_original>
